<compile_context>
chip_gen: v6e
topology: v6e:2x2x1
jax: 0.10.0
libtpu: 0.0.40
codegen_flags: <defaults>
</compile_context>

<pallas_src>
import jax
import jax.numpy as jnp
import numpy as np
from jax.experimental import pallas as pl
from jax.experimental.pallas import tpu as pltpu


def make_decoder_kernel(n_extra_fc, rows_per_block):
    """Kernel body. n_extra_fc = number of hidden fc layers after layer 0."""

    def kernel(*refs):
        (x_ref, wer_ref, wet_ref, be_ref,
         w1f_ref, w1p_ref, w1sa_ref, b1_ref) = refs[:8]
        idx = 8
        extra_fc = []
        for _ in range(n_extra_fc):
            extra_fc.append((refs[idx], refs[idx + 1]))
            idx += 2
        wof_ref, bof_ref, wop_ref, bop_ref = refs[idx:idx + 4]
        out_ref = refs[idx + 4]

        f32 = jnp.float32
        M = rows_per_block

        x = x_ref[...]                 # (M, D_in) packed [latent | state | action]
        xt = jnp.tanh(x)               # squash; only action rows of wet are nonzero

        # Encoders: h_enc = [hs | ha] via block-sparse weights (no lane slicing).
        h_enc = jax.nn.relu(
            jnp.dot(x, wer_ref[...], preferred_element_type=f32)
            + jnp.dot(xt, wet_ref[...], preferred_element_type=f32)
            + be_ref[...])

        # fc layer 0: shared hs/ha contribution computed once.
        shared = (jnp.dot(h_enc, w1sa_ref[...], preferred_element_type=f32)
                  + b1_ref[...])
        h0_full = jnp.dot(x, w1f_ref[...], preferred_element_type=f32) + shared
        h0_part = jnp.dot(x, w1p_ref[...], preferred_element_type=f32) + shared

        # Stack both heads along rows -> hidden stack runs once at 2*M rows.
        h = jax.nn.relu(jnp.concatenate([h0_full, h0_part], axis=0))
        for w_ref, b_ref in extra_fc:
            h = jax.nn.relu(
                jnp.dot(h, w_ref[...], preferred_element_type=f32) + b_ref[...])

        out_full = (jnp.dot(h[:M], wof_ref[...], preferred_element_type=f32)
                    + bof_ref[...])
        out_part = (jnp.dot(h[M:], wop_ref[...], preferred_element_type=f32)
                    + bop_ref[...])

        # Lane-dense transposed writeback: (2*S, M) with lane dim = row tile.
        out_ref[...] = jnp.concatenate(
            [out_full, out_part], axis=-1).T.astype(out_ref.dtype)

    return kernel


def ensemble_state_transition_decoder(latent_state, state, actions, params,
                                      omit_idx=None, row_block=256):
    """
    latent_state: (T, B, ensemble_size, latent_dim) float32
    state:        (T, B, state_dim) float32
    actions:      (T, B, action_dim) float32
    returns (out_full, out_partial), each (T, B, state_dim) float32
    """
    T, B = state.shape[:2]
    N = T * B
    L = params['latent_dim'] * params['ensemble_size']
    Sd = state.shape[-1]
    Ad = actions.shape[-1]
    D_in = L + Sd + Ad

    S_out = params['Wof'].shape[1]
    SE = params['Ws'].shape[1]
    AE = params['Wa'].shape[1]
    H1 = params['fc_Ws'][0].shape[1]

    assert row_block % 8 == 0
    n_blocks = pl.cdiv(N, row_block)
    if n_blocks > 1:
        assert row_block % 128 == 0, \
            "row_block must be a multiple of 128 when tiling rows (lane-dense output)"
    N_pad = n_blocks * row_block

    # Pack per-row inputs [latent | state | actions]; pad rows to N_pad.
    x = jnp.concatenate(
        [latent_state.reshape(N, L), state.reshape(N, Sd), actions.reshape(N, Ad)],
        axis=-1)
    if N_pad != N:
        x = jnp.pad(x, ((0, N_pad - N), (0, 0)))

    # --- one-time weight transforms (done in the wrapper, all static) ---
    # Block-sparse encoder weights so the kernel needs no lane slicing:
    #   x  @ wer -> [ state @ Ws | 0 ],  tanh(x) @ wet -> [ 0 | tanh(act) @ Wa ]
    wer = np.zeros((D_in, SE + AE), np.float32)
    wer[L:L + Sd, :SE] = np.asarray(params['Ws'])
    wet = np.zeros((D_in, SE + AE), np.float32)
    wet[L + Sd:, SE:] = np.asarray(params['Wa'])
    be = jnp.concatenate([params['bs'], params['ba']], axis=-1)

    # fc layer 0 split: latent rows (full / partial with omit rows zeroed) and
    # the shared [state-embed ; action-embed] rows.
    W1 = np.asarray(params['fc_Ws'][0])
    w1f = np.zeros((D_in, H1), np.float32)
    w1f[:L] = W1[:L]
    w1p = w1f.copy()
    if omit_idx is not None:
        w1p[np.asarray(omit_idx, np.int32)] = 0.0   # (x*mask)@W == x@(mask-zeroed W)
    w1sa = W1[L:L + SE + AE]
    b1 = params['fc_bs'][0]

    weight_args = [jnp.asarray(wer), jnp.asarray(wet), be,
                   jnp.asarray(w1f), jnp.asarray(w1p), jnp.asarray(w1sa), b1]
    for W, b in zip(params['fc_Ws'][1:], params['fc_bs'][1:]):
        weight_args += [W, b]
    weight_args += [params['Wof'], params['bof'], params['Wop'], params['bop']]

    def full_spec(arr):
        return pl.BlockSpec(arr.shape, lambda i: (0, 0))

    in_specs = ([pl.BlockSpec((row_block, D_in), lambda i: (i, 0))]
                + [full_spec(w) for w in weight_args])
    out_specs = pl.BlockSpec((2 * S_out, row_block), lambda i: (0, i))
    out_shape = jax.ShapeDtypeStruct((2 * S_out, N_pad), jnp.float32)

    kernel = make_decoder_kernel(len(params['fc_Ws']) - 1, row_block)

    out_t = pl.pallas_call(
        kernel,
        out_shape=out_shape,
        grid_spec=pltpu.PrefetchScalarGridSpec(
            num_scalar_prefetch=0,
            grid=(n_blocks,),
            in_specs=in_specs,
            out_specs=out_specs),
        compiler_params=pltpu.CompilerParams(
            dimension_semantics=("parallel",)),
    )(x, *weight_args)

    out_full = out_t[:S_out, :N].T.reshape(T, B, S_out)
    out_partial = out_t[S_out:, :N].T.reshape(T, B, S_out)
    return out_full, out_partial


def init_params(seed, latent_dim, ensemble_size, state_dim, state_embed_dim,
                action_dim, action_embed_dim, layers):
    """Deterministic PyTorch-Linear-style init: U(-1/sqrt(fan_in), 1/sqrt(fan_in))."""
    key = jax.random.PRNGKey(seed)

    def linear(k, fan_in, fan_out):
        bound = 1.0 / np.sqrt(fan_in)
        kw, kb = jax.random.split(k)
        W = jax.random.uniform(kw, (fan_in, fan_out), jnp.float32, -bound, bound)
        b = jax.random.uniform(kb, (1, fan_out), jnp.float32, -bound, bound)
        return W, b

    keys = jax.random.split(key, 4 + len(layers))
    p = {'latent_dim': latent_dim, 'ensemble_size': ensemble_size}
    p['Ws'], p['bs'] = linear(keys[0], state_dim, state_embed_dim)
    p['Wa'], p['ba'] = linear(keys[1], action_dim, action_embed_dim)
    curr = latent_dim * ensemble_size + state_embed_dim + action_embed_dim
    p['fc_Ws'], p['fc_bs'] = [], []
    for i, h in enumerate(layers):
        W, b = linear(keys[2 + i], curr, h)
        p['fc_Ws'].append(W)
        p['fc_bs'].append(b)
        curr = h
    p['Wof'], p['bof'] = linear(keys[2 + len(layers)], curr, state_dim)
    p['Wop'], p['bop'] = linear(keys[3 + len(layers)], curr, state_dim)
    return p


def reference_forward(latent_state, state, actions, params, omit_idx=None):
    """Pure-JAX reference mirroring the PyTorch forward (for correctness check)."""
    T, B = state.shape[:2]
    L = params['latent_dim'] * params['ensemble_size']
    lat = latent_state.reshape(T, B, L)
    ha = jax.nn.relu(jnp.tanh(actions) @ params['Wa'] + params['ba'])
    hs = jax.nn.relu(state @ params['Ws'] + params['bs'])

    def run(latv, Wout, bout):
        h = jnp.concatenate([latv, hs, ha], axis=-1)
        for W, b in zip(params['fc_Ws'], params['fc_bs']):
            h = jax.nn.relu(h @ W + b)
        return h @ Wout + bout

    lat_p = lat
    if omit_idx is not None:
        lat_p = lat.at[:, :, jnp.asarray(omit_idx)].set(0.0)
    return (run(lat, params['Wof'], params['bof']),
            run(lat_p, params['Wop'], params['bop']))


if __name__ == "__main__":
    # Small shapes consistent with the module's forward.
    T, B = 8, 2                       # seq, batch  -> rows = 16
    latent_dim, ensemble_size = 8, 2  # flattened latent = 16
    state_dim, state_embed_dim = 5, 10
    action_dim, action_embed_dim = 4, 8
    layers = (32, 32)

    params = init_params(42, latent_dim, ensemble_size, state_dim,
                         state_embed_dim, action_dim, action_embed_dim, layers)

    key = jax.random.PRNGKey(0)
    k1, k2, k3 = jax.random.split(key, 3)
    latent_state = jax.random.normal(
        k1, (T, B, ensemble_size, latent_dim), jnp.float32)
    state = jax.random.normal(k2, (T, B, state_dim), jnp.float32)
    actions = jax.random.normal(k3, (T, B, action_dim), jnp.float32)

    # Omit ensemble member 0's latent chunk (indices into flattened latent dim).
    omit_idx = list(range(latent_dim))

    out_full, out_partial = ensemble_state_transition_decoder(
        latent_state, state, actions, params, omit_idx=omit_idx)
    jax.block_until_ready((out_full, out_partial))

    ref_full, ref_partial = reference_forward(
        latent_state, state, actions, params, omit_idx=omit_idx)

    assert out_full.shape == (T, B, state_dim)
    assert out_partial.shape == (T, B, state_dim)
    np.testing.assert_allclose(np.asarray(out_full), np.asarray(ref_full),
                               rtol=1e-4, atol=1e-4)
    np.testing.assert_allclose(np.asarray(out_partial), np.asarray(ref_partial),
                               rtol=1e-4, atol=1e-4)
    print("KERNEL_OK")
</pallas_src>

<mosaic_0001>
module attributes {stable_mosaic.version = 11 : i64} {
  func.func @kernel(%arg0: i32, %arg1: memref<256x25xf32, #tpu.memory_space<vmem>>, %arg2: memref<25x18xf32, #tpu.memory_space<vmem>>, %arg3: memref<25x18xf32, #tpu.memory_space<vmem>>, %arg4: memref<1x18xf32, #tpu.memory_space<vmem>>, %arg5: memref<25x32xf32, #tpu.memory_space<vmem>>, %arg6: memref<25x32xf32, #tpu.memory_space<vmem>>, %arg7: memref<18x32xf32, #tpu.memory_space<vmem>>, %arg8: memref<1x32xf32, #tpu.memory_space<vmem>>, %arg9: memref<32x32xf32, #tpu.memory_space<vmem>>, %arg10: memref<1x32xf32, #tpu.memory_space<vmem>>, %arg11: memref<32x5xf32, #tpu.memory_space<vmem>>, %arg12: memref<1x5xf32, #tpu.memory_space<vmem>>, %arg13: memref<32x5xf32, #tpu.memory_space<vmem>>, %arg14: memref<1x5xf32, #tpu.memory_space<vmem>>, %arg15: memref<10x256xf32, #tpu.memory_space<vmem>>) attributes {dimension_semantics = [#tpu.dimension_semantics<parallel>], iteration_bounds = array<i64: 1>, scalar_prefetch = 0 : i64, scratch_operands = 0 : i64, tpu.core_type = #tpu.core_type<tc>, window_params = [{transform_indices = @transform_0, window_bounds = array<i64: 256, 25>}, {pipeline_mode = #tpu.pipeline_mode<synchronous>, transform_indices = @transform_1, window_bounds = array<i64: 25, 18>}, {pipeline_mode = #tpu.pipeline_mode<synchronous>, transform_indices = @transform_2, window_bounds = array<i64: 25, 18>}, {pipeline_mode = #tpu.pipeline_mode<synchronous>, transform_indices = @transform_3, window_bounds = array<i64: 1, 18>}, {pipeline_mode = #tpu.pipeline_mode<synchronous>, transform_indices = @transform_4, window_bounds = array<i64: 25, 32>}, {pipeline_mode = #tpu.pipeline_mode<synchronous>, transform_indices = @transform_5, window_bounds = array<i64: 25, 32>}, {pipeline_mode = #tpu.pipeline_mode<synchronous>, transform_indices = @transform_6, window_bounds = array<i64: 18, 32>}, {pipeline_mode = #tpu.pipeline_mode<synchronous>, transform_indices = @transform_7, window_bounds = array<i64: 1, 32>}, {pipeline_mode = #tpu.pipeline_mode<synchronous>, transform_indices = @transform_8, window_bounds = array<i64: 32, 32>}, {pipeline_mode = #tpu.pipeline_mode<synchronous>, transform_indices = @transform_9, window_bounds = array<i64: 1, 32>}, {pipeline_mode = #tpu.pipeline_mode<synchronous>, transform_indices = @transform_10, window_bounds = array<i64: 32, 5>}, {pipeline_mode = #tpu.pipeline_mode<synchronous>, transform_indices = @transform_11, window_bounds = array<i64: 1, 5>}, {pipeline_mode = #tpu.pipeline_mode<synchronous>, transform_indices = @transform_12, window_bounds = array<i64: 32, 5>}, {pipeline_mode = #tpu.pipeline_mode<synchronous>, transform_indices = @transform_13, window_bounds = array<i64: 1, 5>}, {transform_indices = @transform_14, window_bounds = array<i64: 10, 256>}]} {
    %c0 = arith.constant 0 : index
    %c0_0 = arith.constant 0 : index
    %0 = vector.load %arg1[%c0, %c0_0] : memref<256x25xf32, #tpu.memory_space<vmem>>, vector<256x25xf32>
    %1 = math.tanh %0 : vector<256x25xf32>
    %c0_1 = arith.constant 0 : index
    %c0_2 = arith.constant 0 : index
    %2 = vector.load %arg2[%c0_1, %c0_2] : memref<25x18xf32, #tpu.memory_space<vmem>>, vector<25x18xf32>
    %cst = arith.constant dense<0.000000e+00> : vector<256x18xf32>
    %3 = tpu.matmul %0, %2, %cst {dimension_numbers = #tpu.dot_dimension_numbers<[1], [0], [0], [1], [0, 0, 1, 1], [], []>} : vector<256x25xf32>, vector<25x18xf32>, vector<256x18xf32> -> vector<256x18xf32>
    %c0_3 = arith.constant 0 : index
    %c0_4 = arith.constant 0 : index
    %4 = vector.load %arg3[%c0_3, %c0_4] : memref<25x18xf32, #tpu.memory_space<vmem>>, vector<25x18xf32>
    %cst_5 = arith.constant dense<0.000000e+00> : vector<256x18xf32>
    %5 = tpu.matmul %1, %4, %cst_5 {dimension_numbers = #tpu.dot_dimension_numbers<[1], [0], [0], [1], [0, 0, 1, 1], [], []>} : vector<256x25xf32>, vector<25x18xf32>, vector<256x18xf32> -> vector<256x18xf32>
    %6 = arith.addf %3, %5 : vector<256x18xf32>
    %c0_6 = arith.constant 0 : index
    %c0_7 = arith.constant 0 : index
    %7 = vector.load %arg4[%c0_6, %c0_7] : memref<1x18xf32, #tpu.memory_space<vmem>>, vector<1x18xf32>
    %8 = vector.broadcast %7 : vector<1x18xf32> to vector<256x18xf32>
    %9 = arith.addf %6, %8 : vector<256x18xf32>
    %cst_8 = arith.constant 0.000000e+00 : f32
    %10 = vector.broadcast %cst_8 : f32 to vector<256x18xf32>
    %11 = arith.maximumf %9, %10 : vector<256x18xf32>
    %c0_9 = arith.constant 0 : index
    %c0_10 = arith.constant 0 : index
    %12 = vector.load %arg7[%c0_9, %c0_10] : memref<18x32xf32, #tpu.memory_space<vmem>>, vector<18x32xf32>
    %cst_11 = arith.constant dense<0.000000e+00> : vector<256x32xf32>
    %13 = tpu.matmul %11, %12, %cst_11 {dimension_numbers = #tpu.dot_dimension_numbers<[1], [0], [0], [1], [0, 0, 1, 1], [], []>} : vector<256x18xf32>, vector<18x32xf32>, vector<256x32xf32> -> vector<256x32xf32>
    %c0_12 = arith.constant 0 : index
    %c0_13 = arith.constant 0 : index
    %14 = vector.load %arg8[%c0_12, %c0_13] : memref<1x32xf32, #tpu.memory_space<vmem>>, vector<1x32xf32>
    %15 = vector.broadcast %14 : vector<1x32xf32> to vector<256x32xf32>
    %16 = arith.addf %13, %15 : vector<256x32xf32>
    %c0_14 = arith.constant 0 : index
    %c0_15 = arith.constant 0 : index
    %17 = vector.load %arg5[%c0_14, %c0_15] : memref<25x32xf32, #tpu.memory_space<vmem>>, vector<25x32xf32>
    %cst_16 = arith.constant dense<0.000000e+00> : vector<256x32xf32>
    %18 = tpu.matmul %0, %17, %cst_16 {dimension_numbers = #tpu.dot_dimension_numbers<[1], [0], [0], [1], [0, 0, 1, 1], [], []>} : vector<256x25xf32>, vector<25x32xf32>, vector<256x32xf32> -> vector<256x32xf32>
    %19 = arith.addf %18, %16 : vector<256x32xf32>
    %c0_17 = arith.constant 0 : index
    %c0_18 = arith.constant 0 : index
    %20 = vector.load %arg6[%c0_17, %c0_18] : memref<25x32xf32, #tpu.memory_space<vmem>>, vector<25x32xf32>
    %cst_19 = arith.constant dense<0.000000e+00> : vector<256x32xf32>
    %21 = tpu.matmul %0, %20, %cst_19 {dimension_numbers = #tpu.dot_dimension_numbers<[1], [0], [0], [1], [0, 0, 1, 1], [], []>} : vector<256x25xf32>, vector<25x32xf32>, vector<256x32xf32> -> vector<256x32xf32>
    %22 = arith.addf %21, %16 : vector<256x32xf32>
    %23 = tpu.concatenate %19, %22 in 0 : vector<256x32xf32>, vector<256x32xf32> -> vector<512x32xf32>
    %cst_20 = arith.constant 0.000000e+00 : f32
    %24 = vector.broadcast %cst_20 : f32 to vector<512x32xf32>
    %25 = arith.maximumf %23, %24 : vector<512x32xf32>
    %c0_21 = arith.constant 0 : index
    %c0_22 = arith.constant 0 : index
    %26 = vector.load %arg9[%c0_21, %c0_22] : memref<32x32xf32, #tpu.memory_space<vmem>>, vector<32x32xf32>
    %cst_23 = arith.constant dense<0.000000e+00> : vector<512x32xf32>
    %27 = tpu.matmul %25, %26, %cst_23 {dimension_numbers = #tpu.dot_dimension_numbers<[1], [0], [0], [1], [0, 0, 1, 1], [], []>} : vector<512x32xf32>, vector<32x32xf32>, vector<512x32xf32> -> vector<512x32xf32>
    %c0_24 = arith.constant 0 : index
    %c0_25 = arith.constant 0 : index
    %28 = vector.load %arg10[%c0_24, %c0_25] : memref<1x32xf32, #tpu.memory_space<vmem>>, vector<1x32xf32>
    %29 = vector.broadcast %28 : vector<1x32xf32> to vector<512x32xf32>
    %30 = arith.addf %27, %29 : vector<512x32xf32>
    %cst_26 = arith.constant 0.000000e+00 : f32
    %31 = vector.broadcast %cst_26 : f32 to vector<512x32xf32>
    %32 = arith.maximumf %30, %31 : vector<512x32xf32>
    %33 = vector.extract_strided_slice %32 {offsets = [0, 0], sizes = [256, 32], strides = [1, 1]} : vector<512x32xf32> to vector<256x32xf32>
    %c0_27 = arith.constant 0 : index
    %c0_28 = arith.constant 0 : index
    %34 = vector.load %arg11[%c0_27, %c0_28] : memref<32x5xf32, #tpu.memory_space<vmem>>, vector<32x5xf32>
    %cst_29 = arith.constant dense<0.000000e+00> : vector<256x5xf32>
    %35 = tpu.matmul %33, %34, %cst_29 {dimension_numbers = #tpu.dot_dimension_numbers<[1], [0], [0], [1], [0, 0, 1, 1], [], []>} : vector<256x32xf32>, vector<32x5xf32>, vector<256x5xf32> -> vector<256x5xf32>
    %c0_30 = arith.constant 0 : index
    %c0_31 = arith.constant 0 : index
    %36 = vector.load %arg12[%c0_30, %c0_31] : memref<1x5xf32, #tpu.memory_space<vmem>>, vector<1x5xf32>
    %37 = vector.broadcast %36 : vector<1x5xf32> to vector<256x5xf32>
    %38 = arith.addf %35, %37 : vector<256x5xf32>
    %39 = vector.extract_strided_slice %32 {offsets = [256, 0], sizes = [256, 32], strides = [1, 1]} : vector<512x32xf32> to vector<256x32xf32>
    %c0_32 = arith.constant 0 : index
    %c0_33 = arith.constant 0 : index
    %40 = vector.load %arg13[%c0_32, %c0_33] : memref<32x5xf32, #tpu.memory_space<vmem>>, vector<32x5xf32>
    %cst_34 = arith.constant dense<0.000000e+00> : vector<256x5xf32>
    %41 = tpu.matmul %39, %40, %cst_34 {dimension_numbers = #tpu.dot_dimension_numbers<[1], [0], [0], [1], [0, 0, 1, 1], [], []>} : vector<256x32xf32>, vector<32x5xf32>, vector<256x5xf32> -> vector<256x5xf32>
    %c0_35 = arith.constant 0 : index
    %c0_36 = arith.constant 0 : index
    %42 = vector.load %arg14[%c0_35, %c0_36] : memref<1x5xf32, #tpu.memory_space<vmem>>, vector<1x5xf32>
    %43 = vector.broadcast %42 : vector<1x5xf32> to vector<256x5xf32>
    %44 = arith.addf %41, %43 : vector<256x5xf32>
    %45 = tpu.concatenate %38, %44 in 1 : vector<256x5xf32>, vector<256x5xf32> -> vector<256x10xf32>
    %46 = tpu.transpose %45, [1, 0] : vector<256x10xf32> -> vector<10x256xf32>
    %c0_37 = arith.constant 0 : index
    %c0_38 = arith.constant 0 : index
    %47 = vector.load %arg15[%c0_37, %c0_38] : memref<10x256xf32, #tpu.memory_space<vmem>>, vector<10x256xf32>
    tpu.vector_store %arg15[%c0_37, %c0_38], %46 {strides = array<i32>} : memref<10x256xf32, #tpu.memory_space<vmem>>, vector<10x256xf32>,
    return
  }
  func.func @transform_0(%arg0: i32) -> (i32, i32) {
    %c0_i32 = arith.constant 0 : i32
    %c0_i32_0 = arith.constant 0 : i32
    return %arg0, %c0_i32 : i32, i32
  }
  func.func @transform_1(%arg0: i32) -> (i32, i32) {
    %c0_i32 = arith.constant 0 : i32
    %c0_i32_0 = arith.constant 0 : i32
    %c0_i32_1 = arith.constant 0 : i32
    return %c0_i32, %c0_i32_0 : i32, i32
  }
  func.func @transform_2(%arg0: i32) -> (i32, i32) {
    %c0_i32 = arith.constant 0 : i32
    %c0_i32_0 = arith.constant 0 : i32
    %c0_i32_1 = arith.constant 0 : i32
    return %c0_i32, %c0_i32_0 : i32, i32
  }
  func.func @transform_3(%arg0: i32) -> (i32, i32) {
    %c0_i32 = arith.constant 0 : i32
    %c0_i32_0 = arith.constant 0 : i32
    %c0_i32_1 = arith.constant 0 : i32
    return %c0_i32, %c0_i32_0 : i32, i32
  }
  func.func @transform_4(%arg0: i32) -> (i32, i32) {
    %c0_i32 = arith.constant 0 : i32
    %c0_i32_0 = arith.constant 0 : i32
    %c0_i32_1 = arith.constant 0 : i32
    return %c0_i32, %c0_i32_0 : i32, i32
  }
  func.func @transform_5(%arg0: i32) -> (i32, i32) {
    %c0_i32 = arith.constant 0 : i32
    %c0_i32_0 = arith.constant 0 : i32
    %c0_i32_1 = arith.constant 0 : i32
    return %c0_i32, %c0_i32_0 : i32, i32
  }
  func.func @transform_6(%arg0: i32) -> (i32, i32) {
    %c0_i32 = arith.constant 0 : i32
    %c0_i32_0 = arith.constant 0 : i32
    %c0_i32_1 = arith.constant 0 : i32
    return %c0_i32, %c0_i32_0 : i32, i32
  }
  func.func @transform_7(%arg0: i32) -> (i32, i32) {
    %c0_i32 = arith.constant 0 : i32
    %c0_i32_0 = arith.constant 0 : i32
    %c0_i32_1 = arith.constant 0 : i32
    return %c0_i32, %c0_i32_0 : i32, i32
  }
  func.func @transform_8(%arg0: i32) -> (i32, i32) {
    %c0_i32 = arith.constant 0 : i32
    %c0_i32_0 = arith.constant 0 : i32
    %c0_i32_1 = arith.constant 0 : i32
    return %c0_i32, %c0_i32_0 : i32, i32
  }
  func.func @transform_9(%arg0: i32) -> (i32, i32) {
    %c0_i32 = arith.constant 0 : i32
    %c0_i32_0 = arith.constant 0 : i32
    %c0_i32_1 = arith.constant 0 : i32
    return %c0_i32, %c0_i32_0 : i32, i32
  }
  func.func @transform_10(%arg0: i32) -> (i32, i32) {
    %c0_i32 = arith.constant 0 : i32
    %c0_i32_0 = arith.constant 0 : i32
    %c0_i32_1 = arith.constant 0 : i32
    return %c0_i32, %c0_i32_0 : i32, i32
  }
  func.func @transform_11(%arg0: i32) -> (i32, i32) {
    %c0_i32 = arith.constant 0 : i32
    %c0_i32_0 = arith.constant 0 : i32
    %c0_i32_1 = arith.constant 0 : i32
    return %c0_i32, %c0_i32_0 : i32, i32
  }
  func.func @transform_12(%arg0: i32) -> (i32, i32) {
    %c0_i32 = arith.constant 0 : i32
    %c0_i32_0 = arith.constant 0 : i32
    %c0_i32_1 = arith.constant 0 : i32
    return %c0_i32, %c0_i32_0 : i32, i32
  }
  func.func @transform_13(%arg0: i32) -> (i32, i32) {
    %c0_i32 = arith.constant 0 : i32
    %c0_i32_0 = arith.constant 0 : i32
    %c0_i32_1 = arith.constant 0 : i32
    return %c0_i32, %c0_i32_0 : i32, i32
  }
  func.func @transform_14(%arg0: i32) -> (i32, i32) {
    %c0_i32 = arith.constant 0 : i32
    %c0_i32_0 = arith.constant 0 : i32
    return %c0_i32, %arg0 : i32, i32
  }
}

</mosaic_0001>

<llo_original>
// kernel: tpu_custom_call.1
$region0: #{tpu_custom_call.1}
  #allocation0 [shape = 'u32[]', space=smem, size = 0x4, offset = 0x4, fixed_abs, tag = 'smem constant byte address 0x4 - core index']
  #allocation1 [shape = 'u32[144,128]{1,0:T(1,128)}', space=vmem, size = 0x12000, scoped, tag = 'internal scratch']
  %s0 = inlined_call_operand.vmem [shape: f32[256,25], index: 0, kind: input, shape index: {}]
  %s1 = inlined_call_operand.vmem [shape: f32[25,18], index: 1, kind: input, shape index: {}]
  %s2 = inlined_call_operand.vmem [shape: f32[25,18], index: 2, kind: input, shape index: {}]
  %s3 = inlined_call_operand.vmem [shape: f32[1,18], index: 3, kind: input, shape index: {}]
  %s4 = inlined_call_operand.vmem [shape: f32[25,32], index: 4, kind: input, shape index: {}]
  %s5 = inlined_call_operand.vmem [shape: f32[25,32], index: 5, kind: input, shape index: {}]
  %s6 = inlined_call_operand.vmem [shape: f32[18,32], index: 6, kind: input, shape index: {}]
  %s7 = inlined_call_operand.vmem [shape: f32[1,32], index: 7, kind: input, shape index: {}]
  %s8 = inlined_call_operand.vmem [shape: f32[32,32], index: 8, kind: input, shape index: {}]
  %s9 = inlined_call_operand.vmem [shape: f32[1,32], index: 9, kind: input, shape index: {}]
  %s10 = inlined_call_operand.vmem [shape: f32[32,5], index: 10, kind: input, shape index: {}]
  %s11 = inlined_call_operand.vmem [shape: f32[1,5], index: 11, kind: input, shape index: {}]
  %s12 = inlined_call_operand.vmem [shape: f32[32,5], index: 12, kind: input, shape index: {}]
  %s13 = inlined_call_operand.vmem [shape: f32[1,5], index: 13, kind: input, shape index: {}]
  %s14 = inlined_call_operand.hbm [shape: f32[10,256], index: 14, kind: output, shape index: {}]
  %s15 = sld [smem:[#allocation0]]
  $region66: #{tpu_custom_call.1} parent=0
    _
  %s17 = ssub.s32 1, %s15
  %s18 = scalar_select 0, %s17, %s15
  $region1: #{tpu_custom_call.1} parent=0
    #allocation2 [shape = 'u8[16384]{0}', space=vmem, size = 0x4000, scoped, tag = 'output window, operand 0, single buffered']
    #allocation3 [shape = 's32[1]{0}', space=sflag, size = 0x4, scoped, tag = 'scoped memory for tpu_custom_call.1']
    %19 = vsyncpa [#allocation3], 0
    // Predicated region
    $region2: #{tpu_custom_call.1} parent=1 // pred_check
      _
    $region3: #{tpu_custom_call.1} parent=1 // pred_check_branch
      %21 = sbr.rel (0) target = $region5
    $region4: #{tpu_custom_call.1} parent=1 // pred_region
      _
    $region5: #{tpu_custom_call.1} parent=1 // pred_fallthru
      _
    // Predicated region
    $region6: #{tpu_custom_call.1} parent=1 // pred_check
      _
    $region7: #{tpu_custom_call.1} parent=1 // pred_check_branch
      %23 = sbr.rel (0) target = $region9
    $region8: #{tpu_custom_call.1} parent=1 // pred_region
      _
    $region9: #{tpu_custom_call.1} parent=1 // pred_fallthru
      _
    // Predicated region
    $region10: #{tpu_custom_call.1} parent=1 // pred_check
      _
    $region11: #{tpu_custom_call.1} parent=1 // pred_check_branch
      %25 = sbr.rel (0) target = $region13
    $region12: #{tpu_custom_call.1} parent=1 // pred_region
      _
    $region13: #{tpu_custom_call.1} parent=1 // pred_fallthru
      _
    // Predicated region
    $region14: #{tpu_custom_call.1} parent=1 // pred_check
      _
    $region15: #{tpu_custom_call.1} parent=1 // pred_check_branch
      %27 = sbr.rel (0) target = $region17
    $region16: #{tpu_custom_call.1} parent=1 // pred_region
      _
    $region17: #{tpu_custom_call.1} parent=1 // pred_fallthru
      _
    // Predicated region
    $region18: #{tpu_custom_call.1} parent=1 // pred_check
      _
    $region19: #{tpu_custom_call.1} parent=1 // pred_check_branch
      %29 = sbr.rel (0) target = $region21
    $region20: #{tpu_custom_call.1} parent=1 // pred_region
      _
    $region21: #{tpu_custom_call.1} parent=1 // pred_fallthru
      _
    // Predicated region
    $region22: #{tpu_custom_call.1} parent=1 // pred_check
      _
    $region23: #{tpu_custom_call.1} parent=1 // pred_check_branch
      %31 = sbr.rel (0) target = $region25
    $region24: #{tpu_custom_call.1} parent=1 // pred_region
      _
    $region25: #{tpu_custom_call.1} parent=1 // pred_fallthru
      _
    // Predicated region
    $region26: #{tpu_custom_call.1} parent=1 // pred_check
      _
    $region27: #{tpu_custom_call.1} parent=1 // pred_check_branch
      %33 = sbr.rel (0) target = $region29
    $region28: #{tpu_custom_call.1} parent=1 // pred_region
      _
    $region29: #{tpu_custom_call.1} parent=1 // pred_fallthru
      _
    // Predicated region
    $region30: #{tpu_custom_call.1} parent=1 // pred_check
      _
    $region31: #{tpu_custom_call.1} parent=1 // pred_check_branch
      %35 = sbr.rel (0) target = $region33
    $region32: #{tpu_custom_call.1} parent=1 // pred_region
      _
    $region33: #{tpu_custom_call.1} parent=1 // pred_fallthru
      _
    // Predicated region
    $region34: #{tpu_custom_call.1} parent=1 // pred_check
      _
    $region35: #{tpu_custom_call.1} parent=1 // pred_check_branch
      %37 = sbr.rel (0) target = $region37
    $region36: #{tpu_custom_call.1} parent=1 // pred_region
      _
    $region37: #{tpu_custom_call.1} parent=1 // pred_fallthru
      _
    // Predicated region
    $region38: #{tpu_custom_call.1} parent=1 // pred_check
      _
    $region39: #{tpu_custom_call.1} parent=1 // pred_check_branch
      %39 = sbr.rel (0) target = $region41
    $region40: #{tpu_custom_call.1} parent=1 // pred_region
      _
    $region41: #{tpu_custom_call.1} parent=1 // pred_fallthru
      _
    // Predicated region
    $region42: #{tpu_custom_call.1} parent=1 // pred_check
      _
    $region43: #{tpu_custom_call.1} parent=1 // pred_check_branch
      %41 = sbr.rel (0) target = $region45
    $region44: #{tpu_custom_call.1} parent=1 // pred_region
      _
    $region45: #{tpu_custom_call.1} parent=1 // pred_fallthru
      _
    // Predicated region
    $region46: #{tpu_custom_call.1} parent=1 // pred_check
      _
    $region47: #{tpu_custom_call.1} parent=1 // pred_check_branch
      %43 = sbr.rel (0) target = $region49
    $region48: #{tpu_custom_call.1} parent=1 // pred_region
      _
    $region49: #{tpu_custom_call.1} parent=1 // pred_fallthru
      _
    // Predicated region
    $region50: #{tpu_custom_call.1} parent=1 // pred_check
      _
    $region51: #{tpu_custom_call.1} parent=1 // pred_check_branch
      %45 = sbr.rel (0) target = $region53
    $region52: #{tpu_custom_call.1} parent=1 // pred_region
      _
    $region53: #{tpu_custom_call.1} parent=1 // pred_fallthru
      _
    // Predicated region
    $region54: #{tpu_custom_call.1} parent=1 // pred_check
      _
    $region55: #{tpu_custom_call.1} parent=1 // pred_check_branch
      %47 = sbr.rel (0) target = $region57
    $region56: #{tpu_custom_call.1} parent=1 // pred_region
      _
    $region57: #{tpu_custom_call.1} parent=1 // pred_fallthru
      _
    %v48 = vld [vmem:[%s0] sm:$0xff]
    %v49 = vld [vmem:[%s0 + $0x8] sm:$0xff]
    %v50 = vld [vmem:[%s0 + $0x10] sm:$0xff]
    %v51 = vld [vmem:[%s0 + $0x18] sm:$0xff]
    %v52 = vld [vmem:[%s0 + $0x20] sm:$0xff]
    %v53 = vld [vmem:[%s0 + $0x28] sm:$0xff]
    %v54 = vld [vmem:[%s0 + $0x30] sm:$0xff]
    %v55 = vld [vmem:[%s0 + $0x38] sm:$0xff]
    %v56 = vld [vmem:[%s0 + $0x40] sm:$0xff]
    %v57 = vld [vmem:[%s0 + $0x48] sm:$0xff]
    %v58 = vld [vmem:[%s0 + $0x50] sm:$0xff]
    %v59 = vld [vmem:[%s0 + $0x58] sm:$0xff]
    %v60 = vld [vmem:[%s0 + $0x60] sm:$0xff]
    %v61 = vld [vmem:[%s0 + $0x68] sm:$0xff]
    %v62 = vld [vmem:[%s0 + $0x70] sm:$0xff]
    %v63 = vld [vmem:[%s0 + $0x78] sm:$0xff]
    %v64 = vld [vmem:[%s0 + $0x80] sm:$0xff]
    %v65 = vld [vmem:[%s0 + $0x88] sm:$0xff]
    %v66 = vld [vmem:[%s0 + $0x90] sm:$0xff]
    %v67 = vld [vmem:[%s0 + $0x98] sm:$0xff]
    %v68 = vld [vmem:[%s0 + $0xa0] sm:$0xff]
    %v69 = vld [vmem:[%s0 + $0xa8] sm:$0xff]
    %v70 = vld [vmem:[%s0 + $0xb0] sm:$0xff]
    %v71 = vld [vmem:[%s0 + $0xb8] sm:$0xff]
    %v72 = vld [vmem:[%s0 + $0xc0] sm:$0xff]
    %v73 = vld [vmem:[%s0 + $0xc8] sm:$0xff]
    %v74 = vld [vmem:[%s0 + $0xd0] sm:$0xff]
    %v75 = vld [vmem:[%s0 + $0xd8] sm:$0xff]
    %v76 = vld [vmem:[%s0 + $0xe0] sm:$0xff]
    %v77 = vld [vmem:[%s0 + $0xe8] sm:$0xff]
    %v78 = vld [vmem:[%s0 + $0xf0] sm:$0xff]
    %v79 = vld [vmem:[%s0 + $0xf8] sm:$0xff]
    %v80 = vtanh.pop %v48
    %v81 = vtanh.pop %v49
    %v82 = vtanh.pop %v50
    %v83 = vtanh.pop %v51
    %v84 = vtanh.pop %v52
    %v85 = vtanh.pop %v53
    %v86 = vtanh.pop %v54
    %v87 = vtanh.pop %v55
    %v88 = vtanh.pop %v56
    %v89 = vtanh.pop %v57
    %v90 = vtanh.pop %v58
    %v91 = vtanh.pop %v59
    %v92 = vtanh.pop %v60
    %v93 = vtanh.pop %v61
    %v94 = vtanh.pop %v62
    %v95 = vtanh.pop %v63
    %v96 = vtanh.pop %v64
    %v97 = vtanh.pop %v65
    %v98 = vtanh.pop %v66
    %v99 = vtanh.pop %v67
    %v100 = vtanh.pop %v68
    %v101 = vtanh.pop %v69
    %v102 = vtanh.pop %v70
    %v103 = vtanh.pop %v71
    %v104 = vtanh.pop %v72
    %v105 = vtanh.pop %v73
    %v106 = vtanh.pop %v74
    %v107 = vtanh.pop %v75
    %v108 = vtanh.pop %v76
    %v109 = vtanh.pop %v77
    %v110 = vtanh.pop %v78
    %v111 = vtanh.pop %v79
    %v112 = vld [vmem:[%s1] sm:$0xff]
    %v113 = vld [vmem:[%s1 + $0x8] sm:$0xff]
    %v114 = vld [vmem:[%s1 + $0x10] sm:$0xff]
    %v115 = vld [vmem:[%s1 + $0x18] sm:$0x1]
    %v116 = vld [vmem:[%s2] sm:$0xff]
    %v117 = vld [vmem:[%s2 + $0x8] sm:$0xff]
    %v118 = vld [vmem:[%s2 + $0x10] sm:$0xff]
    %v119 = vld [vmem:[%s2 + $0x18] sm:$0x1]
    %vm120 = vcmask 203776
    %v122 = vsel %vm120, %v80, 0
    %v125 = vsel %vm120, %v81, 0
    %v128 = vsel %vm120, %v82, 0
    %v131 = vsel %vm120, %v83, 0
    %v134 = vsel %vm120, %v84, 0
    %v137 = vsel %vm120, %v85, 0
    %v140 = vsel %vm120, %v86, 0
    %v143 = vsel %vm120, %v87, 0
    %v146 = vsel %vm120, %v88, 0
    %v149 = vsel %vm120, %v89, 0
    %v152 = vsel %vm120, %v90, 0
    %v155 = vsel %vm120, %v91, 0
    %v158 = vsel %vm120, %v92, 0
    %v161 = vsel %vm120, %v93, 0
    %v164 = vsel %vm120, %v94, 0
    %v167 = vsel %vm120, %v95, 0
    %v170 = vsel %vm120, %v96, 0
    %v173 = vsel %vm120, %v97, 0
    %v176 = vsel %vm120, %v98, 0
    %v179 = vsel %vm120, %v99, 0
    %v182 = vsel %vm120, %v100, 0
    %v185 = vsel %vm120, %v101, 0
    %v188 = vsel %vm120, %v102, 0
    %v191 = vsel %vm120, %v103, 0
    %v194 = vsel %vm120, %v104, 0
    %v197 = vsel %vm120, %v105, 0
    %v200 = vsel %vm120, %v106, 0
    %v203 = vsel %vm120, %v107, 0
    %v206 = vsel %vm120, %v108, 0
    %v209 = vsel %vm120, %v109, 0
    %v212 = vsel %vm120, %v110, 0
    %v215 = vsel %vm120, %v111, 0
    %vm217 = vcmask 1040384
    %v219 = vsel %vm217, %v119, 0
    %221 = vmatprep.subr.mxu0 0.0
    %222 = vmatpush1.msra.mxu0 0.0
    %223 = vmatprep.subr.mxu0 0.0
    %224 = vmatpush1.msra.mxu0 0.0
    %225 = vmatprep.subr.mxu0 0.0
    %226 = vmatpush1.msra.mxu0 0.0
    %227 = vmatprep.subr.mxu0 0.0
    %228 = vmatpush1.msra.mxu0 0.0
    %229 = vmatprep.subr.mxu0 0.0
    %230 = vmatpush1.msra.mxu0 0.0
    %231 = vmatprep.subr.mxu0 0.0
    %232 = vmatpush1.msra.mxu0 0.0
    %233 = vmatprep.subr.mxu0 0.0
    %234 = vmatpush1.msra.mxu0 0.0
    %235 = vmatprep.subr.mxu0 0.0
    %236 = vmatpush1.msra.mxu0 0.0
    %237 = vmatprep.subr.mxu0 0.0
    %238 = vmatpush1.msra.mxu0 0.0
    %239 = vmatprep.subr.mxu0 0.0
    %240 = vmatpush1.msra.mxu0 0.0
    %241 = vmatprep.subr.mxu0 0.0
    %242 = vmatpush1.msra.mxu0 0.0
    %243 = vmatprep.subr.mxu0 0.0
    %244 = vmatpush1.msra.mxu0 0.0
    %245 = vmatprep.subr.mxu0 0.0
    %246 = vmatpush1.msra.mxu0 %v219
    %247 = vmatprep.subr.mxu0 0.0
    %248 = vmatpush1.msra.mxu0 %v118
    %249 = vmatprep.subr.mxu0 0.0
    %250 = vmatpush1.msra.mxu0 %v117
    %251 = vmatprep.subr.mxu0 0.0
    %252 = vmatpush1.msra.mxu0 %v116
    %253 = vmatprep.subr.mxu0 0.0
    %254 = vmatpush2.msra.mxu0 0.0
    %255 = vmatprep.subr.mxu0 0.0
    %256 = vmatpush2.msra.mxu0 0.0
    %257 = vmatprep.subr.mxu0 0.0
    %258 = vmatpush2.msra.mxu0 0.0
    %259 = vmatprep.subr.mxu0 0.0
    %260 = vmatpush2.msra.mxu0 0.0
    %261 = vmatprep.subr.mxu0 0.0
    %262 = vmatpush2.msra.mxu0 0.0
    %263 = vmatprep.subr.mxu0 0.0
    %264 = vmatpush2.msra.mxu0 0.0
    %265 = vmatprep.subr.mxu0 0.0
    %266 = vmatpush2.msra.mxu0 0.0
    %267 = vmatprep.subr.mxu0 0.0
    %268 = vmatpush2.msra.mxu0 0.0
    %269 = vmatprep.subr.mxu0 0.0
    %270 = vmatpush2.msra.mxu0 0.0
    %271 = vmatprep.subr.mxu0 0.0
    %272 = vmatpush2.msra.mxu0 0.0
    %273 = vmatprep.subr.mxu0 0.0
    %274 = vmatpush2.msra.mxu0 0.0
    %275 = vmatprep.subr.mxu0 0.0
    %276 = vmatpush2.msra.mxu0 0.0
    %277 = vmatprep.subr.mxu0 0.0
    %278 = vmatpush2.msra.mxu0 0.0
    %279 = vmatprep.subr.mxu0 0.0
    %280 = vmatpush2.msra.mxu0 0.0
    %281 = vmatprep.subr.mxu0 0.0
    %282 = vmatpush2.msra.mxu0 0.0
    %283 = vmatprep.subr.mxu0 0.0
    %284 = vmatpush2.msra.mxu0 0.0
    %285 = vmatprep.mubr.f32.mxu0 0.0
    %286 = vmatmul.mubr.f32.gmra.mxu0 %v122
    %v287 = vpop.f32.mrf.mxu0
    %v288 = vadd.f32 0.0, %v287
    %v289 = vpop.f32.mrf.mxu0
    %290 = vmatprep.mubr.f32.mxu0 0.0
    %291 = vmatmul.mubr.f32.gmra.mxu0 %v125
    %v292 = vpop.f32.mrf.mxu0
    %v293 = vadd.f32 0.0, %v292
    %v294 = vpop.f32.mrf.mxu0
    %295 = vmatprep.mubr.f32.mxu0 0.0
    %296 = vmatmul.mubr.f32.gmra.mxu0 %v128
    %v297 = vpop.f32.mrf.mxu0
    %v298 = vadd.f32 0.0, %v297
    %v299 = vpop.f32.mrf.mxu0
    %300 = vmatprep.mubr.f32.mxu0 0.0
    %301 = vmatmul.mubr.f32.gmra.mxu0 %v131
    %v302 = vpop.f32.mrf.mxu0
    %v303 = vadd.f32 0.0, %v302
    %v304 = vpop.f32.mrf.mxu0
    %305 = vmatprep.mubr.f32.mxu0 0.0
    %306 = vmatmul.mubr.f32.gmra.mxu0 %v134
    %v307 = vpop.f32.mrf.mxu0
    %v308 = vadd.f32 0.0, %v307
    %v309 = vpop.f32.mrf.mxu0
    %310 = vmatprep.mubr.f32.mxu0 0.0
    %311 = vmatmul.mubr.f32.gmra.mxu0 %v137
    %v312 = vpop.f32.mrf.mxu0
    %v313 = vadd.f32 0.0, %v312
    %v314 = vpop.f32.mrf.mxu0
    %315 = vmatprep.mubr.f32.mxu0 0.0
    %316 = vmatmul.mubr.f32.gmra.mxu0 %v140
    %v317 = vpop.f32.mrf.mxu0
    %v318 = vadd.f32 0.0, %v317
    %v319 = vpop.f32.mrf.mxu0
    %320 = vmatprep.mubr.f32.mxu0 0.0
    %321 = vmatmul.mubr.f32.gmra.mxu0 %v143
    %v322 = vpop.f32.mrf.mxu0
    %v323 = vadd.f32 0.0, %v322
    %v324 = vpop.f32.mrf.mxu0
    %325 = vmatprep.mubr.f32.mxu0 0.0
    %326 = vmatmul.mubr.f32.gmra.mxu0 %v146
    %v327 = vpop.f32.mrf.mxu0
    %v328 = vadd.f32 0.0, %v327
    %v329 = vpop.f32.mrf.mxu0
    %330 = vmatprep.mubr.f32.mxu0 0.0
    %331 = vmatmul.mubr.f32.gmra.mxu0 %v149
    %v332 = vpop.f32.mrf.mxu0
    %v333 = vadd.f32 0.0, %v332
    %v334 = vpop.f32.mrf.mxu0
    %335 = vmatprep.mubr.f32.mxu0 0.0
    %336 = vmatmul.mubr.f32.gmra.mxu0 %v152
    %v337 = vpop.f32.mrf.mxu0
    %v338 = vadd.f32 0.0, %v337
    %v339 = vpop.f32.mrf.mxu0
    %340 = vmatprep.mubr.f32.mxu0 0.0
    %341 = vmatmul.mubr.f32.gmra.mxu0 %v155
    %v342 = vpop.f32.mrf.mxu0
    %v343 = vadd.f32 0.0, %v342
    %v344 = vpop.f32.mrf.mxu0
    %345 = vmatprep.mubr.f32.mxu0 0.0
    %346 = vmatmul.mubr.f32.gmra.mxu0 %v158
    %v347 = vpop.f32.mrf.mxu0
    %v348 = vadd.f32 0.0, %v347
    %v349 = vpop.f32.mrf.mxu0
    %350 = vmatprep.mubr.f32.mxu0 0.0
    %351 = vmatmul.mubr.f32.gmra.mxu0 %v161
    %v352 = vpop.f32.mrf.mxu0
    %v353 = vadd.f32 0.0, %v352
    %v354 = vpop.f32.mrf.mxu0
    %355 = vmatprep.mubr.f32.mxu0 0.0
    %356 = vmatmul.mubr.f32.gmra.mxu0 %v164
    %v357 = vpop.f32.mrf.mxu0
    %v358 = vadd.f32 0.0, %v357
    %v359 = vpop.f32.mrf.mxu0
    %360 = vmatprep.mubr.f32.mxu0 0.0
    %361 = vmatmul.mubr.f32.gmra.mxu0 %v167
    %v362 = vpop.f32.mrf.mxu0
    %v363 = vadd.f32 0.0, %v362
    %v364 = vpop.f32.mrf.mxu0
    %365 = vmatprep.mubr.f32.mxu0 0.0
    %366 = vmatmul.mubr.f32.gmra.mxu0 %v170
    %v367 = vpop.f32.mrf.mxu0
    %v368 = vadd.f32 0.0, %v367
    %v369 = vpop.f32.mrf.mxu0
    %370 = vmatprep.mubr.f32.mxu0 0.0
    %371 = vmatmul.mubr.f32.gmra.mxu0 %v173
    %v372 = vpop.f32.mrf.mxu0
    %v373 = vadd.f32 0.0, %v372
    %v374 = vpop.f32.mrf.mxu0
    %375 = vmatprep.mubr.f32.mxu0 0.0
    %376 = vmatmul.mubr.f32.gmra.mxu0 %v176
    %v377 = vpop.f32.mrf.mxu0
    %v378 = vadd.f32 0.0, %v377
    %v379 = vpop.f32.mrf.mxu0
    %380 = vmatprep.mubr.f32.mxu0 0.0
    %381 = vmatmul.mubr.f32.gmra.mxu0 %v179
    %v382 = vpop.f32.mrf.mxu0
    %v383 = vadd.f32 0.0, %v382
    %v384 = vpop.f32.mrf.mxu0
    %385 = vmatprep.mubr.f32.mxu0 0.0
    %386 = vmatmul.mubr.f32.gmra.mxu0 %v182
    %v387 = vpop.f32.mrf.mxu0
    %v388 = vadd.f32 0.0, %v387
    %v389 = vpop.f32.mrf.mxu0
    %390 = vmatprep.mubr.f32.mxu0 0.0
    %391 = vmatmul.mubr.f32.gmra.mxu0 %v185
    %v392 = vpop.f32.mrf.mxu0
    %v393 = vadd.f32 0.0, %v392
    %v394 = vpop.f32.mrf.mxu0
    %395 = vmatprep.mubr.f32.mxu0 0.0
    %396 = vmatmul.mubr.f32.gmra.mxu0 %v188
    %v397 = vpop.f32.mrf.mxu0
    %v398 = vadd.f32 0.0, %v397
    %v399 = vpop.f32.mrf.mxu0
    %400 = vmatprep.mubr.f32.mxu0 0.0
    %401 = vmatmul.mubr.f32.gmra.mxu0 %v191
    %v402 = vpop.f32.mrf.mxu0
    %v403 = vadd.f32 0.0, %v402
    %v404 = vpop.f32.mrf.mxu0
    %405 = vmatprep.mubr.f32.mxu0 0.0
    %406 = vmatmul.mubr.f32.gmra.mxu0 %v194
    %v407 = vpop.f32.mrf.mxu0
    %v408 = vadd.f32 0.0, %v407
    %v409 = vpop.f32.mrf.mxu0
    %410 = vmatprep.mubr.f32.mxu0 0.0
    %411 = vmatmul.mubr.f32.gmra.mxu0 %v197
    %v412 = vpop.f32.mrf.mxu0
    %v413 = vadd.f32 0.0, %v412
    %v414 = vpop.f32.mrf.mxu0
    %415 = vmatprep.mubr.f32.mxu0 0.0
    %416 = vmatmul.mubr.f32.gmra.mxu0 %v200
    %v417 = vpop.f32.mrf.mxu0
    %v418 = vadd.f32 0.0, %v417
    %v419 = vpop.f32.mrf.mxu0
    %420 = vmatprep.mubr.f32.mxu0 0.0
    %421 = vmatmul.mubr.f32.gmra.mxu0 %v203
    %v422 = vpop.f32.mrf.mxu0
    %v423 = vadd.f32 0.0, %v422
    %v424 = vpop.f32.mrf.mxu0
    %425 = vmatprep.mubr.f32.mxu0 0.0
    %426 = vmatmul.mubr.f32.gmra.mxu0 %v206
    %v427 = vpop.f32.mrf.mxu0
    %v428 = vadd.f32 0.0, %v427
    %v429 = vpop.f32.mrf.mxu0
    %430 = vmatprep.mubr.f32.mxu0 0.0
    %431 = vmatmul.mubr.f32.gmra.mxu0 %v209
    %v432 = vpop.f32.mrf.mxu0
    %v433 = vadd.f32 0.0, %v432
    %v434 = vpop.f32.mrf.mxu0
    %435 = vmatprep.mubr.f32.mxu0 0.0
    %436 = vmatmul.mubr.f32.gmra.mxu0 %v212
    %v437 = vpop.f32.mrf.mxu0
    %v438 = vadd.f32 0.0, %v437
    %v439 = vpop.f32.mrf.mxu0
    %440 = vmatprep.mubr.f32.mxu0 0.0
    %441 = vmatmul.mubr.f32.gmra.mxu0 %v215
    %v442 = vpop.f32.mrf.mxu0
    %v443 = vadd.f32 0.0, %v442
    %v444 = vpop.f32.mrf.mxu0
    %445 = vdwg.mxu0
    %v447 = vsel %vm120, %v48, 0
    %v450 = vsel %vm120, %v49, 0
    %v453 = vsel %vm120, %v50, 0
    %v456 = vsel %vm120, %v51, 0
    %v459 = vsel %vm120, %v52, 0
    %v462 = vsel %vm120, %v53, 0
    %v465 = vsel %vm120, %v54, 0
    %v468 = vsel %vm120, %v55, 0
    %v471 = vsel %vm120, %v56, 0
    %v474 = vsel %vm120, %v57, 0
    %v477 = vsel %vm120, %v58, 0
    %v480 = vsel %vm120, %v59, 0
    %v483 = vsel %vm120, %v60, 0
    %v486 = vsel %vm120, %v61, 0
    %v489 = vsel %vm120, %v62, 0
    %v492 = vsel %vm120, %v63, 0
    %v495 = vsel %vm120, %v64, 0
    %v498 = vsel %vm120, %v65, 0
    %v501 = vsel %vm120, %v66, 0
    %v504 = vsel %vm120, %v67, 0
    %v507 = vsel %vm120, %v68, 0
    %v510 = vsel %vm120, %v69, 0
    %v513 = vsel %vm120, %v70, 0
    %v516 = vsel %vm120, %v71, 0
    %v519 = vsel %vm120, %v72, 0
    %v522 = vsel %vm120, %v73, 0
    %v525 = vsel %vm120, %v74, 0
    %v528 = vsel %vm120, %v75, 0
    %v531 = vsel %vm120, %v76, 0
    %v534 = vsel %vm120, %v77, 0
    %v537 = vsel %vm120, %v78, 0
    %v540 = vsel %vm120, %v79, 0
    %v543 = vsel %vm217, %v115, 0
    %545 = vmatprep.subr.mxu0 0.0
    %546 = vmatpush1.msra.mxu0 0.0
    %547 = vmatprep.subr.mxu0 0.0
    %548 = vmatpush1.msra.mxu0 0.0
    %549 = vmatprep.subr.mxu0 0.0
    %550 = vmatpush1.msra.mxu0 0.0
    %551 = vmatprep.subr.mxu0 0.0
    %552 = vmatpush1.msra.mxu0 0.0
    %553 = vmatprep.subr.mxu0 0.0
    %554 = vmatpush1.msra.mxu0 0.0
    %555 = vmatprep.subr.mxu0 0.0
    %556 = vmatpush1.msra.mxu0 0.0
    %557 = vmatprep.subr.mxu0 0.0
    %558 = vmatpush1.msra.mxu0 0.0
    %559 = vmatprep.subr.mxu0 0.0
    %560 = vmatpush1.msra.mxu0 0.0
    %561 = vmatprep.subr.mxu0 0.0
    %562 = vmatpush1.msra.mxu0 0.0
    %563 = vmatprep.subr.mxu0 0.0
    %564 = vmatpush1.msra.mxu0 0.0
    %565 = vmatprep.subr.mxu0 0.0
    %566 = vmatpush1.msra.mxu0 0.0
    %567 = vmatprep.subr.mxu0 0.0
    %568 = vmatpush1.msra.mxu0 0.0
    %569 = vmatprep.subr.mxu0 0.0
    %570 = vmatpush1.msra.mxu0 %v543
    %571 = vmatprep.subr.mxu0 0.0
    %572 = vmatpush1.msra.mxu0 %v114
    %573 = vmatprep.subr.mxu0 0.0
    %574 = vmatpush1.msra.mxu0 %v113
    %575 = vmatprep.subr.mxu0 0.0
    %576 = vmatpush1.msra.mxu0 %v112
    %577 = vmatprep.subr.mxu0 0.0
    %578 = vmatpush2.msra.mxu0 0.0
    %579 = vmatprep.subr.mxu0 0.0
    %580 = vmatpush2.msra.mxu0 0.0
    %581 = vmatprep.subr.mxu0 0.0
    %582 = vmatpush2.msra.mxu0 0.0
    %583 = vmatprep.subr.mxu0 0.0
    %584 = vmatpush2.msra.mxu0 0.0
    %585 = vmatprep.subr.mxu0 0.0
    %586 = vmatpush2.msra.mxu0 0.0
    %587 = vmatprep.subr.mxu0 0.0
    %588 = vmatpush2.msra.mxu0 0.0
    %589 = vmatprep.subr.mxu0 0.0
    %590 = vmatpush2.msra.mxu0 0.0
    %591 = vmatprep.subr.mxu0 0.0
    %592 = vmatpush2.msra.mxu0 0.0
    %593 = vmatprep.subr.mxu0 0.0
    %594 = vmatpush2.msra.mxu0 0.0
    %595 = vmatprep.subr.mxu0 0.0
    %596 = vmatpush2.msra.mxu0 0.0
    %597 = vmatprep.subr.mxu0 0.0
    %598 = vmatpush2.msra.mxu0 0.0
    %599 = vmatprep.subr.mxu0 0.0
    %600 = vmatpush2.msra.mxu0 0.0
    %601 = vmatprep.subr.mxu0 0.0
    %602 = vmatpush2.msra.mxu0 0.0
    %603 = vmatprep.subr.mxu0 0.0
    %604 = vmatpush2.msra.mxu0 0.0
    %605 = vmatprep.subr.mxu0 0.0
    %606 = vmatpush2.msra.mxu0 0.0
    %607 = vmatprep.subr.mxu0 0.0
    %608 = vmatpush2.msra.mxu0 0.0
    %609 = vmatprep.mubr.f32.mxu0 0.0
    %610 = vmatmul.mubr.f32.gmra.mxu0 %v447
    %v611 = vpop.f32.mrf.mxu0
    %v612 = vadd.f32 %v288, %v611
    %v613 = vpop.f32.mrf.mxu0
    %614 = vmatprep.mubr.f32.mxu0 0.0
    %615 = vmatmul.mubr.f32.gmra.mxu0 %v450
    %v616 = vpop.f32.mrf.mxu0
    %v617 = vadd.f32 %v293, %v616
    %v618 = vpop.f32.mrf.mxu0
    %619 = vmatprep.mubr.f32.mxu0 0.0
    %620 = vmatmul.mubr.f32.gmra.mxu0 %v453
    %v621 = vpop.f32.mrf.mxu0
    %v622 = vadd.f32 %v298, %v621
    %v623 = vpop.f32.mrf.mxu0
    %624 = vmatprep.mubr.f32.mxu0 0.0
    %625 = vmatmul.mubr.f32.gmra.mxu0 %v456
    %v626 = vpop.f32.mrf.mxu0
    %v627 = vadd.f32 %v303, %v626
    %v628 = vpop.f32.mrf.mxu0
    %629 = vmatprep.mubr.f32.mxu0 0.0
    %630 = vmatmul.mubr.f32.gmra.mxu0 %v459
    %v631 = vpop.f32.mrf.mxu0
    %v632 = vadd.f32 %v308, %v631
    %v633 = vpop.f32.mrf.mxu0
    %634 = vmatprep.mubr.f32.mxu0 0.0
    %635 = vmatmul.mubr.f32.gmra.mxu0 %v462
    %v636 = vpop.f32.mrf.mxu0
    %v637 = vadd.f32 %v313, %v636
    %v638 = vpop.f32.mrf.mxu0
    %639 = vmatprep.mubr.f32.mxu0 0.0
    %640 = vmatmul.mubr.f32.gmra.mxu0 %v465
    %v641 = vpop.f32.mrf.mxu0
    %v642 = vadd.f32 %v318, %v641
    %v643 = vpop.f32.mrf.mxu0
    %644 = vmatprep.mubr.f32.mxu0 0.0
    %645 = vmatmul.mubr.f32.gmra.mxu0 %v468
    %v646 = vpop.f32.mrf.mxu0
    %v647 = vadd.f32 %v323, %v646
    %v648 = vpop.f32.mrf.mxu0
    %649 = vmatprep.mubr.f32.mxu0 0.0
    %650 = vmatmul.mubr.f32.gmra.mxu0 %v471
    %v651 = vpop.f32.mrf.mxu0
    %v652 = vadd.f32 %v328, %v651
    %v653 = vpop.f32.mrf.mxu0
    %654 = vmatprep.mubr.f32.mxu0 0.0
    %655 = vmatmul.mubr.f32.gmra.mxu0 %v474
    %v656 = vpop.f32.mrf.mxu0
    %v657 = vadd.f32 %v333, %v656
    %v658 = vpop.f32.mrf.mxu0
    %659 = vmatprep.mubr.f32.mxu0 0.0
    %660 = vmatmul.mubr.f32.gmra.mxu0 %v477
    %v661 = vpop.f32.mrf.mxu0
    %v662 = vadd.f32 %v338, %v661
    %v663 = vpop.f32.mrf.mxu0
    %664 = vmatprep.mubr.f32.mxu0 0.0
    %665 = vmatmul.mubr.f32.gmra.mxu0 %v480
    %v666 = vpop.f32.mrf.mxu0
    %v667 = vadd.f32 %v343, %v666
    %v668 = vpop.f32.mrf.mxu0
    %669 = vmatprep.mubr.f32.mxu0 0.0
    %670 = vmatmul.mubr.f32.gmra.mxu0 %v483
    %v671 = vpop.f32.mrf.mxu0
    %v672 = vadd.f32 %v348, %v671
    %v673 = vpop.f32.mrf.mxu0
    %674 = vmatprep.mubr.f32.mxu0 0.0
    %675 = vmatmul.mubr.f32.gmra.mxu0 %v486
    %v676 = vpop.f32.mrf.mxu0
    %v677 = vadd.f32 %v353, %v676
    %v678 = vpop.f32.mrf.mxu0
    %679 = vmatprep.mubr.f32.mxu0 0.0
    %680 = vmatmul.mubr.f32.gmra.mxu0 %v489
    %v681 = vpop.f32.mrf.mxu0
    %v682 = vadd.f32 %v358, %v681
    %v683 = vpop.f32.mrf.mxu0
    %684 = vmatprep.mubr.f32.mxu0 0.0
    %685 = vmatmul.mubr.f32.gmra.mxu0 %v492
    %v686 = vpop.f32.mrf.mxu0
    %v687 = vadd.f32 %v363, %v686
    %v688 = vpop.f32.mrf.mxu0
    %689 = vmatprep.mubr.f32.mxu0 0.0
    %690 = vmatmul.mubr.f32.gmra.mxu0 %v495
    %v691 = vpop.f32.mrf.mxu0
    %v692 = vadd.f32 %v368, %v691
    %v693 = vpop.f32.mrf.mxu0
    %694 = vmatprep.mubr.f32.mxu0 0.0
    %695 = vmatmul.mubr.f32.gmra.mxu0 %v498
    %v696 = vpop.f32.mrf.mxu0
    %v697 = vadd.f32 %v373, %v696
    %v698 = vpop.f32.mrf.mxu0
    %699 = vmatprep.mubr.f32.mxu0 0.0
    %700 = vmatmul.mubr.f32.gmra.mxu0 %v501
    %v701 = vpop.f32.mrf.mxu0
    %v702 = vadd.f32 %v378, %v701
    %v703 = vpop.f32.mrf.mxu0
    %704 = vmatprep.mubr.f32.mxu0 0.0
    %705 = vmatmul.mubr.f32.gmra.mxu0 %v504
    %v706 = vpop.f32.mrf.mxu0
    %v707 = vadd.f32 %v383, %v706
    %v708 = vpop.f32.mrf.mxu0
    %709 = vmatprep.mubr.f32.mxu0 0.0
    %710 = vmatmul.mubr.f32.gmra.mxu0 %v507
    %v711 = vpop.f32.mrf.mxu0
    %v712 = vadd.f32 %v388, %v711
    %v713 = vpop.f32.mrf.mxu0
    %714 = vmatprep.mubr.f32.mxu0 0.0
    %715 = vmatmul.mubr.f32.gmra.mxu0 %v510
    %v716 = vpop.f32.mrf.mxu0
    %v717 = vadd.f32 %v393, %v716
    %v718 = vpop.f32.mrf.mxu0
    %719 = vmatprep.mubr.f32.mxu0 0.0
    %720 = vmatmul.mubr.f32.gmra.mxu0 %v513
    %v721 = vpop.f32.mrf.mxu0
    %v722 = vadd.f32 %v398, %v721
    %v723 = vpop.f32.mrf.mxu0
    %724 = vmatprep.mubr.f32.mxu0 0.0
    %725 = vmatmul.mubr.f32.gmra.mxu0 %v516
    %v726 = vpop.f32.mrf.mxu0
    %v727 = vadd.f32 %v403, %v726
    %v728 = vpop.f32.mrf.mxu0
    %729 = vmatprep.mubr.f32.mxu0 0.0
    %730 = vmatmul.mubr.f32.gmra.mxu0 %v519
    %v731 = vpop.f32.mrf.mxu0
    %v732 = vadd.f32 %v408, %v731
    %v733 = vpop.f32.mrf.mxu0
    %734 = vmatprep.mubr.f32.mxu0 0.0
    %735 = vmatmul.mubr.f32.gmra.mxu0 %v522
    %v736 = vpop.f32.mrf.mxu0
    %v737 = vadd.f32 %v413, %v736
    %v738 = vpop.f32.mrf.mxu0
    %739 = vmatprep.mubr.f32.mxu0 0.0
    %740 = vmatmul.mubr.f32.gmra.mxu0 %v525
    %v741 = vpop.f32.mrf.mxu0
    %v742 = vadd.f32 %v418, %v741
    %v743 = vpop.f32.mrf.mxu0
    %744 = vmatprep.mubr.f32.mxu0 0.0
    %745 = vmatmul.mubr.f32.gmra.mxu0 %v528
    %v746 = vpop.f32.mrf.mxu0
    %v747 = vadd.f32 %v423, %v746
    %v748 = vpop.f32.mrf.mxu0
    %749 = vmatprep.mubr.f32.mxu0 0.0
    %750 = vmatmul.mubr.f32.gmra.mxu0 %v531
    %v751 = vpop.f32.mrf.mxu0
    %v752 = vadd.f32 %v428, %v751
    %v753 = vpop.f32.mrf.mxu0
    %754 = vmatprep.mubr.f32.mxu0 0.0
    %755 = vmatmul.mubr.f32.gmra.mxu0 %v534
    %v756 = vpop.f32.mrf.mxu0
    %v757 = vadd.f32 %v433, %v756
    %v758 = vpop.f32.mrf.mxu0
    %759 = vmatprep.mubr.f32.mxu0 0.0
    %760 = vmatmul.mubr.f32.gmra.mxu0 %v537
    %v761 = vpop.f32.mrf.mxu0
    %v762 = vadd.f32 %v438, %v761
    %v763 = vpop.f32.mrf.mxu0
    %764 = vmatprep.mubr.f32.mxu0 0.0
    %765 = vmatmul.mubr.f32.gmra.mxu0 %v540
    %v766 = vpop.f32.mrf.mxu0
    %v767 = vadd.f32 %v443, %v766
    %v768 = vpop.f32.mrf.mxu0
    %769 = vdwg.mxu0
    %v770 = vld [vmem:[%s3] sm:$0x1]
    %v772 = vlaneseq
    %v773 = vshrl.u32 %v772, 7
    %v774 = vsub.s32 0, %v773
    %v775 = vrot.slane %v770, %v774
    %v777 = vadd.f32 %v612, %v775
    %v778 = vadd.f32 %v617, %v775
    %v779 = vadd.f32 %v622, %v775
    %v780 = vadd.f32 %v627, %v775
    %v781 = vadd.f32 %v632, %v775
    %v782 = vadd.f32 %v637, %v775
    %v783 = vadd.f32 %v642, %v775
    %v784 = vadd.f32 %v647, %v775
    %v785 = vadd.f32 %v652, %v775
    %v786 = vadd.f32 %v657, %v775
    %v787 = vadd.f32 %v662, %v775
    %v788 = vadd.f32 %v667, %v775
    %v789 = vadd.f32 %v672, %v775
    %v790 = vadd.f32 %v677, %v775
    %v791 = vadd.f32 %v682, %v775
    %v792 = vadd.f32 %v687, %v775
    %v793 = vadd.f32 %v692, %v775
    %v794 = vadd.f32 %v697, %v775
    %v795 = vadd.f32 %v702, %v775
    %v796 = vadd.f32 %v707, %v775
    %v797 = vadd.f32 %v712, %v775
    %v798 = vadd.f32 %v717, %v775
    %v799 = vadd.f32 %v722, %v775
    %v800 = vadd.f32 %v727, %v775
    %v801 = vadd.f32 %v732, %v775
    %v802 = vadd.f32 %v737, %v775
    %v803 = vadd.f32 %v742, %v775
    %v804 = vadd.f32 %v747, %v775
    %v805 = vadd.f32 %v752, %v775
    %v806 = vadd.f32 %v757, %v775
    %v807 = vadd.f32 %v762, %v775
    %v808 = vadd.f32 %v767, %v775
    %v809 = vmax.f32 %v777, 0.0
    %v810 = vmax.f32 %v778, 0.0
    %v811 = vmax.f32 %v779, 0.0
    %v812 = vmax.f32 %v780, 0.0
    %v813 = vmax.f32 %v781, 0.0
    %v814 = vmax.f32 %v782, 0.0
    %v815 = vmax.f32 %v783, 0.0
    %v816 = vmax.f32 %v784, 0.0
    %v817 = vmax.f32 %v785, 0.0
    %v818 = vmax.f32 %v786, 0.0
    %v819 = vmax.f32 %v787, 0.0
    %v820 = vmax.f32 %v788, 0.0
    %v821 = vmax.f32 %v789, 0.0
    %v822 = vmax.f32 %v790, 0.0
    %v823 = vmax.f32 %v791, 0.0
    %v824 = vmax.f32 %v792, 0.0
    %v825 = vmax.f32 %v793, 0.0
    %v826 = vmax.f32 %v794, 0.0
    %v827 = vmax.f32 %v795, 0.0
    %v828 = vmax.f32 %v796, 0.0
    %v829 = vmax.f32 %v797, 0.0
    %v830 = vmax.f32 %v798, 0.0
    %v831 = vmax.f32 %v799, 0.0
    %v832 = vmax.f32 %v800, 0.0
    %v833 = vmax.f32 %v801, 0.0
    %v834 = vmax.f32 %v802, 0.0
    %v835 = vmax.f32 %v803, 0.0
    %v836 = vmax.f32 %v804, 0.0
    %v837 = vmax.f32 %v805, 0.0
    %v838 = vmax.f32 %v806, 0.0
    %v839 = vmax.f32 %v807, 0.0
    %v840 = vmax.f32 %v808, 0.0
    %v841 = vld [vmem:[%s6] sm:$0xff]
    %v842 = vld [vmem:[%s6 + $0x8] sm:$0xff]
    %v843 = vld [vmem:[%s6 + $0x10] sm:$0x3]
    %v844 = vld [vmem:[%s7] sm:$0x1]
    %v846 = vlaneseq
    %v847 = vshrl.u32 %v846, 7
    %v848 = vsub.s32 0, %v847
    %v849 = vrot.slane %v844, %v848
    %vm851 = vcmask 146432
    %v853 = vsel %vm851, %v809, 0
    %v856 = vsel %vm851, %v810, 0
    %v859 = vsel %vm851, %v811, 0
    %v862 = vsel %vm851, %v812, 0
    %v865 = vsel %vm851, %v813, 0
    %v868 = vsel %vm851, %v814, 0
    %v871 = vsel %vm851, %v815, 0
    %v874 = vsel %vm851, %v816, 0
    %v877 = vsel %vm851, %v817, 0
    %v880 = vsel %vm851, %v818, 0
    %v883 = vsel %vm851, %v819, 0
    %v886 = vsel %vm851, %v820, 0
    %v889 = vsel %vm851, %v821, 0
    %v892 = vsel %vm851, %v822, 0
    %v895 = vsel %vm851, %v823, 0
    %v898 = vsel %vm851, %v824, 0
    %v901 = vsel %vm851, %v825, 0
    %v904 = vsel %vm851, %v826, 0
    %v907 = vsel %vm851, %v827, 0
    %v910 = vsel %vm851, %v828, 0
    %v913 = vsel %vm851, %v829, 0
    %v916 = vsel %vm851, %v830, 0
    %v919 = vsel %vm851, %v831, 0
    %v922 = vsel %vm851, %v832, 0
    %v925 = vsel %vm851, %v833, 0
    %v928 = vsel %vm851, %v834, 0
    %v931 = vsel %vm851, %v835, 0
    %v934 = vsel %vm851, %v836, 0
    %v937 = vsel %vm851, %v837, 0
    %v940 = vsel %vm851, %v838, 0
    %v943 = vsel %vm851, %v839, 0
    %v946 = vsel %vm851, %v840, 0
    %vm948 = vcmask 1041408
    %v950 = vsel %vm948, %v843, 0
    %952 = vmatprep.subr.mxu0 0.0
    %953 = vmatpush1.msra.mxu0 0.0
    %954 = vmatprep.subr.mxu0 0.0
    %955 = vmatpush1.msra.mxu0 0.0
    %956 = vmatprep.subr.mxu0 0.0
    %957 = vmatpush1.msra.mxu0 0.0
    %958 = vmatprep.subr.mxu0 0.0
    %959 = vmatpush1.msra.mxu0 0.0
    %960 = vmatprep.subr.mxu0 0.0
    %961 = vmatpush1.msra.mxu0 0.0
    %962 = vmatprep.subr.mxu0 0.0
    %963 = vmatpush1.msra.mxu0 0.0
    %964 = vmatprep.subr.mxu0 0.0
    %965 = vmatpush1.msra.mxu0 0.0
    %966 = vmatprep.subr.mxu0 0.0
    %967 = vmatpush1.msra.mxu0 0.0
    %968 = vmatprep.subr.mxu0 0.0
    %969 = vmatpush1.msra.mxu0 0.0
    %970 = vmatprep.subr.mxu0 0.0
    %971 = vmatpush1.msra.mxu0 0.0
    %972 = vmatprep.subr.mxu0 0.0
    %973 = vmatpush1.msra.mxu0 0.0
    %974 = vmatprep.subr.mxu0 0.0
    %975 = vmatpush1.msra.mxu0 0.0
    %976 = vmatprep.subr.mxu0 0.0
    %977 = vmatpush1.msra.mxu0 0.0
    %978 = vmatprep.subr.mxu0 0.0
    %979 = vmatpush1.msra.mxu0 %v950
    %980 = vmatprep.subr.mxu0 0.0
    %981 = vmatpush1.msra.mxu0 %v842
    %982 = vmatprep.subr.mxu0 0.0
    %983 = vmatpush1.msra.mxu0 %v841
    %984 = vmatprep.subr.mxu0 0.0
    %985 = vmatpush2.msra.mxu0 0.0
    %986 = vmatprep.subr.mxu0 0.0
    %987 = vmatpush2.msra.mxu0 0.0
    %988 = vmatprep.subr.mxu0 0.0
    %989 = vmatpush2.msra.mxu0 0.0
    %990 = vmatprep.subr.mxu0 0.0
    %991 = vmatpush2.msra.mxu0 0.0
    %992 = vmatprep.subr.mxu0 0.0
    %993 = vmatpush2.msra.mxu0 0.0
    %994 = vmatprep.subr.mxu0 0.0
    %995 = vmatpush2.msra.mxu0 0.0
    %996 = vmatprep.subr.mxu0 0.0
    %997 = vmatpush2.msra.mxu0 0.0
    %998 = vmatprep.subr.mxu0 0.0
    %999 = vmatpush2.msra.mxu0 0.0
    %1000 = vmatprep.subr.mxu0 0.0
    %1001 = vmatpush2.msra.mxu0 0.0
    %1002 = vmatprep.subr.mxu0 0.0
    %1003 = vmatpush2.msra.mxu0 0.0
    %1004 = vmatprep.subr.mxu0 0.0
    %1005 = vmatpush2.msra.mxu0 0.0
    %1006 = vmatprep.subr.mxu0 0.0
    %1007 = vmatpush2.msra.mxu0 0.0
    %1008 = vmatprep.subr.mxu0 0.0
    %1009 = vmatpush2.msra.mxu0 0.0
    %1010 = vmatprep.subr.mxu0 0.0
    %1011 = vmatpush2.msra.mxu0 0.0
    %1012 = vmatprep.subr.mxu0 0.0
    %1013 = vmatpush2.msra.mxu0 0.0
    %1014 = vmatprep.subr.mxu0 0.0
    %1015 = vmatpush2.msra.mxu0 0.0
    %1016 = vmatprep.mubr.f32.mxu0 0.0
    %1017 = vmatmul.mubr.f32.gmra.mxu0 %v853
    %v1018 = vpop.f32.mrf.mxu0
    %v1019 = vadd.f32 %v849, %v1018
    %v1020 = vpop.f32.mrf.mxu0
    %1021 = vmatprep.mubr.f32.mxu0 0.0
    %1022 = vmatmul.mubr.f32.gmra.mxu0 %v856
    %v1023 = vpop.f32.mrf.mxu0
    %v1024 = vadd.f32 %v849, %v1023
    %v1025 = vpop.f32.mrf.mxu0
    %1026 = vmatprep.mubr.f32.mxu0 0.0
    %1027 = vmatmul.mubr.f32.gmra.mxu0 %v859
    %v1028 = vpop.f32.mrf.mxu0
    %v1029 = vadd.f32 %v849, %v1028
    %v1030 = vpop.f32.mrf.mxu0
    %1031 = vmatprep.mubr.f32.mxu0 0.0
    %1032 = vmatmul.mubr.f32.gmra.mxu0 %v862
    %v1033 = vpop.f32.mrf.mxu0
    %v1034 = vadd.f32 %v849, %v1033
    %v1035 = vpop.f32.mrf.mxu0
    %1036 = vmatprep.mubr.f32.mxu0 0.0
    %1037 = vmatmul.mubr.f32.gmra.mxu0 %v865
    %v1038 = vpop.f32.mrf.mxu0
    %v1039 = vadd.f32 %v849, %v1038
    %v1040 = vpop.f32.mrf.mxu0
    %1041 = vmatprep.mubr.f32.mxu0 0.0
    %1042 = vmatmul.mubr.f32.gmra.mxu0 %v868
    %v1043 = vpop.f32.mrf.mxu0
    %v1044 = vadd.f32 %v849, %v1043
    %v1045 = vpop.f32.mrf.mxu0
    %1046 = vmatprep.mubr.f32.mxu0 0.0
    %1047 = vmatmul.mubr.f32.gmra.mxu0 %v871
    %v1048 = vpop.f32.mrf.mxu0
    %v1049 = vadd.f32 %v849, %v1048
    %v1050 = vpop.f32.mrf.mxu0
    %1051 = vmatprep.mubr.f32.mxu0 0.0
    %1052 = vmatmul.mubr.f32.gmra.mxu0 %v874
    %v1053 = vpop.f32.mrf.mxu0
    %v1054 = vadd.f32 %v849, %v1053
    %v1055 = vpop.f32.mrf.mxu0
    %1056 = vmatprep.mubr.f32.mxu0 0.0
    %1057 = vmatmul.mubr.f32.gmra.mxu0 %v877
    %v1058 = vpop.f32.mrf.mxu0
    %v1059 = vadd.f32 %v849, %v1058
    %v1060 = vpop.f32.mrf.mxu0
    %1061 = vmatprep.mubr.f32.mxu0 0.0
    %1062 = vmatmul.mubr.f32.gmra.mxu0 %v880
    %v1063 = vpop.f32.mrf.mxu0
    %v1064 = vadd.f32 %v849, %v1063
    %v1065 = vpop.f32.mrf.mxu0
    %1066 = vmatprep.mubr.f32.mxu0 0.0
    %1067 = vmatmul.mubr.f32.gmra.mxu0 %v883
    %v1068 = vpop.f32.mrf.mxu0
    %v1069 = vadd.f32 %v849, %v1068
    %v1070 = vpop.f32.mrf.mxu0
    %1071 = vmatprep.mubr.f32.mxu0 0.0
    %1072 = vmatmul.mubr.f32.gmra.mxu0 %v886
    %v1073 = vpop.f32.mrf.mxu0
    %v1074 = vadd.f32 %v849, %v1073
    %v1075 = vpop.f32.mrf.mxu0
    %1076 = vmatprep.mubr.f32.mxu0 0.0
    %1077 = vmatmul.mubr.f32.gmra.mxu0 %v889
    %v1078 = vpop.f32.mrf.mxu0
    %v1079 = vadd.f32 %v849, %v1078
    %v1080 = vpop.f32.mrf.mxu0
    %1081 = vmatprep.mubr.f32.mxu0 0.0
    %1082 = vmatmul.mubr.f32.gmra.mxu0 %v892
    %v1083 = vpop.f32.mrf.mxu0
    %v1084 = vadd.f32 %v849, %v1083
    %v1085 = vpop.f32.mrf.mxu0
    %1086 = vmatprep.mubr.f32.mxu0 0.0
    %1087 = vmatmul.mubr.f32.gmra.mxu0 %v895
    %v1088 = vpop.f32.mrf.mxu0
    %v1089 = vadd.f32 %v849, %v1088
    %v1090 = vpop.f32.mrf.mxu0
    %1091 = vmatprep.mubr.f32.mxu0 0.0
    %1092 = vmatmul.mubr.f32.gmra.mxu0 %v898
    %v1093 = vpop.f32.mrf.mxu0
    %v1094 = vadd.f32 %v849, %v1093
    %v1095 = vpop.f32.mrf.mxu0
    %1096 = vmatprep.mubr.f32.mxu0 0.0
    %1097 = vmatmul.mubr.f32.gmra.mxu0 %v901
    %v1098 = vpop.f32.mrf.mxu0
    %v1099 = vadd.f32 %v849, %v1098
    %v1100 = vpop.f32.mrf.mxu0
    %1101 = vmatprep.mubr.f32.mxu0 0.0
    %1102 = vmatmul.mubr.f32.gmra.mxu0 %v904
    %v1103 = vpop.f32.mrf.mxu0
    %v1104 = vadd.f32 %v849, %v1103
    %v1105 = vpop.f32.mrf.mxu0
    %1106 = vmatprep.mubr.f32.mxu0 0.0
    %1107 = vmatmul.mubr.f32.gmra.mxu0 %v907
    %v1108 = vpop.f32.mrf.mxu0
    %v1109 = vadd.f32 %v849, %v1108
    %v1110 = vpop.f32.mrf.mxu0
    %1111 = vmatprep.mubr.f32.mxu0 0.0
    %1112 = vmatmul.mubr.f32.gmra.mxu0 %v910
    %v1113 = vpop.f32.mrf.mxu0
    %v1114 = vadd.f32 %v849, %v1113
    %v1115 = vpop.f32.mrf.mxu0
    %1116 = vmatprep.mubr.f32.mxu0 0.0
    %1117 = vmatmul.mubr.f32.gmra.mxu0 %v913
    %v1118 = vpop.f32.mrf.mxu0
    %v1119 = vadd.f32 %v849, %v1118
    %v1120 = vpop.f32.mrf.mxu0
    %1121 = vmatprep.mubr.f32.mxu0 0.0
    %1122 = vmatmul.mubr.f32.gmra.mxu0 %v916
    %v1123 = vpop.f32.mrf.mxu0
    %v1124 = vadd.f32 %v849, %v1123
    %v1125 = vpop.f32.mrf.mxu0
    %1126 = vmatprep.mubr.f32.mxu0 0.0
    %1127 = vmatmul.mubr.f32.gmra.mxu0 %v919
    %v1128 = vpop.f32.mrf.mxu0
    %v1129 = vadd.f32 %v849, %v1128
    %v1130 = vpop.f32.mrf.mxu0
    %1131 = vmatprep.mubr.f32.mxu0 0.0
    %1132 = vmatmul.mubr.f32.gmra.mxu0 %v922
    %v1133 = vpop.f32.mrf.mxu0
    %v1134 = vadd.f32 %v849, %v1133
    %v1135 = vpop.f32.mrf.mxu0
    %1136 = vmatprep.mubr.f32.mxu0 0.0
    %1137 = vmatmul.mubr.f32.gmra.mxu0 %v925
    %v1138 = vpop.f32.mrf.mxu0
    %v1139 = vadd.f32 %v849, %v1138
    %v1140 = vpop.f32.mrf.mxu0
    %1141 = vmatprep.mubr.f32.mxu0 0.0
    %1142 = vmatmul.mubr.f32.gmra.mxu0 %v928
    %v1143 = vpop.f32.mrf.mxu0
    %v1144 = vadd.f32 %v849, %v1143
    %v1145 = vpop.f32.mrf.mxu0
    %1146 = vmatprep.mubr.f32.mxu0 0.0
    %1147 = vmatmul.mubr.f32.gmra.mxu0 %v931
    %v1148 = vpop.f32.mrf.mxu0
    %v1149 = vadd.f32 %v849, %v1148
    %v1150 = vpop.f32.mrf.mxu0
    %1151 = vmatprep.mubr.f32.mxu0 0.0
    %1152 = vmatmul.mubr.f32.gmra.mxu0 %v934
    %v1153 = vpop.f32.mrf.mxu0
    %v1154 = vadd.f32 %v849, %v1153
    %v1155 = vpop.f32.mrf.mxu0
    %1156 = vmatprep.mubr.f32.mxu0 0.0
    %1157 = vmatmul.mubr.f32.gmra.mxu0 %v937
    %v1158 = vpop.f32.mrf.mxu0
    %v1159 = vadd.f32 %v849, %v1158
    %v1160 = vpop.f32.mrf.mxu0
    %1161 = vmatprep.mubr.f32.mxu0 0.0
    %1162 = vmatmul.mubr.f32.gmra.mxu0 %v940
    %v1163 = vpop.f32.mrf.mxu0
    %v1164 = vadd.f32 %v849, %v1163
    %v1165 = vpop.f32.mrf.mxu0
    %1166 = vmatprep.mubr.f32.mxu0 0.0
    %1167 = vmatmul.mubr.f32.gmra.mxu0 %v943
    %v1168 = vpop.f32.mrf.mxu0
    %v1169 = vadd.f32 %v849, %v1168
    %v1170 = vpop.f32.mrf.mxu0
    %1171 = vmatprep.mubr.f32.mxu0 0.0
    %1172 = vmatmul.mubr.f32.gmra.mxu0 %v946
    %v1173 = vpop.f32.mrf.mxu0
    %v1174 = vadd.f32 %v849, %v1173
    %v1175 = vpop.f32.mrf.mxu0
    %1176 = vdwg.mxu0
    %v1177 = vld [vmem:[%s4] sm:$0xff]
    %v1178 = vld [vmem:[%s4 + $0x8] sm:$0xff]
    %v1179 = vld [vmem:[%s4 + $0x10] sm:$0xff]
    %v1180 = vld [vmem:[%s4 + $0x18] sm:$0x1]
    %v1182 = vsel %vm217, %v1180, 0
    %1184 = vmatprep.subr.mxu0 0.0
    %1185 = vmatpush1.msra.mxu0 0.0
    %1186 = vmatprep.subr.mxu0 0.0
    %1187 = vmatpush1.msra.mxu0 0.0
    %1188 = vmatprep.subr.mxu0 0.0
    %1189 = vmatpush1.msra.mxu0 0.0
    %1190 = vmatprep.subr.mxu0 0.0
    %1191 = vmatpush1.msra.mxu0 0.0
    %1192 = vmatprep.subr.mxu0 0.0
    %1193 = vmatpush1.msra.mxu0 0.0
    %1194 = vmatprep.subr.mxu0 0.0
    %1195 = vmatpush1.msra.mxu0 0.0
    %1196 = vmatprep.subr.mxu0 0.0
    %1197 = vmatpush1.msra.mxu0 0.0
    %1198 = vmatprep.subr.mxu0 0.0
    %1199 = vmatpush1.msra.mxu0 0.0
    %1200 = vmatprep.subr.mxu0 0.0
    %1201 = vmatpush1.msra.mxu0 0.0
    %1202 = vmatprep.subr.mxu0 0.0
    %1203 = vmatpush1.msra.mxu0 0.0
    %1204 = vmatprep.subr.mxu0 0.0
    %1205 = vmatpush1.msra.mxu0 0.0
    %1206 = vmatprep.subr.mxu0 0.0
    %1207 = vmatpush1.msra.mxu0 0.0
    %1208 = vmatprep.subr.mxu0 0.0
    %1209 = vmatpush1.msra.mxu0 %v1182
    %1210 = vmatprep.subr.mxu0 0.0
    %1211 = vmatpush1.msra.mxu0 %v1179
    %1212 = vmatprep.subr.mxu0 0.0
    %1213 = vmatpush1.msra.mxu0 %v1178
    %1214 = vmatprep.subr.mxu0 0.0
    %1215 = vmatpush1.msra.mxu0 %v1177
    %1216 = vmatprep.subr.mxu0 0.0
    %1217 = vmatpush2.msra.mxu0 0.0
    %1218 = vmatprep.subr.mxu0 0.0
    %1219 = vmatpush2.msra.mxu0 0.0
    %1220 = vmatprep.subr.mxu0 0.0
    %1221 = vmatpush2.msra.mxu0 0.0
    %1222 = vmatprep.subr.mxu0 0.0
    %1223 = vmatpush2.msra.mxu0 0.0
    %1224 = vmatprep.subr.mxu0 0.0
    %1225 = vmatpush2.msra.mxu0 0.0
    %1226 = vmatprep.subr.mxu0 0.0
    %1227 = vmatpush2.msra.mxu0 0.0
    %1228 = vmatprep.subr.mxu0 0.0
    %1229 = vmatpush2.msra.mxu0 0.0
    %1230 = vmatprep.subr.mxu0 0.0
    %1231 = vmatpush2.msra.mxu0 0.0
    %1232 = vmatprep.subr.mxu0 0.0
    %1233 = vmatpush2.msra.mxu0 0.0
    %1234 = vmatprep.subr.mxu0 0.0
    %1235 = vmatpush2.msra.mxu0 0.0
    %1236 = vmatprep.subr.mxu0 0.0
    %1237 = vmatpush2.msra.mxu0 0.0
    %1238 = vmatprep.subr.mxu0 0.0
    %1239 = vmatpush2.msra.mxu0 0.0
    %1240 = vmatprep.subr.mxu0 0.0
    %1241 = vmatpush2.msra.mxu0 0.0
    %1242 = vmatprep.subr.mxu0 0.0
    %1243 = vmatpush2.msra.mxu0 0.0
    %1244 = vmatprep.subr.mxu0 0.0
    %1245 = vmatpush2.msra.mxu0 0.0
    %1246 = vmatprep.subr.mxu0 0.0
    %1247 = vmatpush2.msra.mxu0 0.0
    %1248 = vmatprep.mubr.f32.mxu0 0.0
    %1249 = vmatmul.mubr.f32.gmra.mxu0 %v447
    %v1250 = vpop.f32.mrf.mxu0
    %v1251 = vadd.f32 %v1019, %v1250
    %v1252 = vpop.f32.mrf.mxu0
    %1253 = vmatprep.mubr.f32.mxu0 0.0
    %1254 = vmatmul.mubr.f32.gmra.mxu0 %v450
    %v1255 = vpop.f32.mrf.mxu0
    %v1256 = vadd.f32 %v1024, %v1255
    %v1257 = vpop.f32.mrf.mxu0
    %1258 = vmatprep.mubr.f32.mxu0 0.0
    %1259 = vmatmul.mubr.f32.gmra.mxu0 %v453
    %v1260 = vpop.f32.mrf.mxu0
    %v1261 = vadd.f32 %v1029, %v1260
    %v1262 = vpop.f32.mrf.mxu0
    %1263 = vmatprep.mubr.f32.mxu0 0.0
    %1264 = vmatmul.mubr.f32.gmra.mxu0 %v456
    %v1265 = vpop.f32.mrf.mxu0
    %v1266 = vadd.f32 %v1034, %v1265
    %v1267 = vpop.f32.mrf.mxu0
    %1268 = vmatprep.mubr.f32.mxu0 0.0
    %1269 = vmatmul.mubr.f32.gmra.mxu0 %v459
    %v1270 = vpop.f32.mrf.mxu0
    %v1271 = vadd.f32 %v1039, %v1270
    %v1272 = vpop.f32.mrf.mxu0
    %1273 = vmatprep.mubr.f32.mxu0 0.0
    %1274 = vmatmul.mubr.f32.gmra.mxu0 %v462
    %v1275 = vpop.f32.mrf.mxu0
    %v1276 = vadd.f32 %v1044, %v1275
    %v1277 = vpop.f32.mrf.mxu0
    %1278 = vmatprep.mubr.f32.mxu0 0.0
    %1279 = vmatmul.mubr.f32.gmra.mxu0 %v465
    %v1280 = vpop.f32.mrf.mxu0
    %v1281 = vadd.f32 %v1049, %v1280
    %v1282 = vpop.f32.mrf.mxu0
    %1283 = vmatprep.mubr.f32.mxu0 0.0
    %1284 = vmatmul.mubr.f32.gmra.mxu0 %v468
    %v1285 = vpop.f32.mrf.mxu0
    %v1286 = vadd.f32 %v1054, %v1285
    %v1287 = vpop.f32.mrf.mxu0
    %1288 = vmatprep.mubr.f32.mxu0 0.0
    %1289 = vmatmul.mubr.f32.gmra.mxu0 %v471
    %v1290 = vpop.f32.mrf.mxu0
    %v1291 = vadd.f32 %v1059, %v1290
    %v1292 = vpop.f32.mrf.mxu0
    %1293 = vmatprep.mubr.f32.mxu0 0.0
    %1294 = vmatmul.mubr.f32.gmra.mxu0 %v474
    %v1295 = vpop.f32.mrf.mxu0
    %v1296 = vadd.f32 %v1064, %v1295
    %v1297 = vpop.f32.mrf.mxu0
    %1298 = vmatprep.mubr.f32.mxu0 0.0
    %1299 = vmatmul.mubr.f32.gmra.mxu0 %v477
    %v1300 = vpop.f32.mrf.mxu0
    %v1301 = vadd.f32 %v1069, %v1300
    %v1302 = vpop.f32.mrf.mxu0
    %1303 = vmatprep.mubr.f32.mxu0 0.0
    %1304 = vmatmul.mubr.f32.gmra.mxu0 %v480
    %v1305 = vpop.f32.mrf.mxu0
    %v1306 = vadd.f32 %v1074, %v1305
    %v1307 = vpop.f32.mrf.mxu0
    %1308 = vmatprep.mubr.f32.mxu0 0.0
    %1309 = vmatmul.mubr.f32.gmra.mxu0 %v483
    %v1310 = vpop.f32.mrf.mxu0
    %v1311 = vadd.f32 %v1079, %v1310
    %v1312 = vpop.f32.mrf.mxu0
    %1313 = vmatprep.mubr.f32.mxu0 0.0
    %1314 = vmatmul.mubr.f32.gmra.mxu0 %v486
    %v1315 = vpop.f32.mrf.mxu0
    %v1316 = vadd.f32 %v1084, %v1315
    %v1317 = vpop.f32.mrf.mxu0
    %1318 = vmatprep.mubr.f32.mxu0 0.0
    %1319 = vmatmul.mubr.f32.gmra.mxu0 %v489
    %v1320 = vpop.f32.mrf.mxu0
    %v1321 = vadd.f32 %v1089, %v1320
    %v1322 = vpop.f32.mrf.mxu0
    %1323 = vmatprep.mubr.f32.mxu0 0.0
    %1324 = vmatmul.mubr.f32.gmra.mxu0 %v492
    %v1325 = vpop.f32.mrf.mxu0
    %v1326 = vadd.f32 %v1094, %v1325
    %v1327 = vpop.f32.mrf.mxu0
    %1328 = vmatprep.mubr.f32.mxu0 0.0
    %1329 = vmatmul.mubr.f32.gmra.mxu0 %v495
    %v1330 = vpop.f32.mrf.mxu0
    %v1331 = vadd.f32 %v1099, %v1330
    %v1332 = vpop.f32.mrf.mxu0
    %1333 = vmatprep.mubr.f32.mxu0 0.0
    %1334 = vmatmul.mubr.f32.gmra.mxu0 %v498
    %v1335 = vpop.f32.mrf.mxu0
    %v1336 = vadd.f32 %v1104, %v1335
    %v1337 = vpop.f32.mrf.mxu0
    %1338 = vmatprep.mubr.f32.mxu0 0.0
    %1339 = vmatmul.mubr.f32.gmra.mxu0 %v501
    %v1340 = vpop.f32.mrf.mxu0
    %v1341 = vadd.f32 %v1109, %v1340
    %v1342 = vpop.f32.mrf.mxu0
    %1343 = vmatprep.mubr.f32.mxu0 0.0
    %1344 = vmatmul.mubr.f32.gmra.mxu0 %v504
    %v1345 = vpop.f32.mrf.mxu0
    %v1346 = vadd.f32 %v1114, %v1345
    %v1347 = vpop.f32.mrf.mxu0
    %1348 = vmatprep.mubr.f32.mxu0 0.0
    %1349 = vmatmul.mubr.f32.gmra.mxu0 %v507
    %v1350 = vpop.f32.mrf.mxu0
    %v1351 = vadd.f32 %v1119, %v1350
    %v1352 = vpop.f32.mrf.mxu0
    %1353 = vmatprep.mubr.f32.mxu0 0.0
    %1354 = vmatmul.mubr.f32.gmra.mxu0 %v510
    %v1355 = vpop.f32.mrf.mxu0
    %v1356 = vadd.f32 %v1124, %v1355
    %v1357 = vpop.f32.mrf.mxu0
    %1358 = vmatprep.mubr.f32.mxu0 0.0
    %1359 = vmatmul.mubr.f32.gmra.mxu0 %v513
    %v1360 = vpop.f32.mrf.mxu0
    %v1361 = vadd.f32 %v1129, %v1360
    %v1362 = vpop.f32.mrf.mxu0
    %1363 = vmatprep.mubr.f32.mxu0 0.0
    %1364 = vmatmul.mubr.f32.gmra.mxu0 %v516
    %v1365 = vpop.f32.mrf.mxu0
    %v1366 = vadd.f32 %v1134, %v1365
    %v1367 = vpop.f32.mrf.mxu0
    %1368 = vmatprep.mubr.f32.mxu0 0.0
    %1369 = vmatmul.mubr.f32.gmra.mxu0 %v519
    %v1370 = vpop.f32.mrf.mxu0
    %v1371 = vadd.f32 %v1139, %v1370
    %v1372 = vpop.f32.mrf.mxu0
    %1373 = vmatprep.mubr.f32.mxu0 0.0
    %1374 = vmatmul.mubr.f32.gmra.mxu0 %v522
    %v1375 = vpop.f32.mrf.mxu0
    %v1376 = vadd.f32 %v1144, %v1375
    %v1377 = vpop.f32.mrf.mxu0
    %1378 = vmatprep.mubr.f32.mxu0 0.0
    %1379 = vmatmul.mubr.f32.gmra.mxu0 %v525
    %v1380 = vpop.f32.mrf.mxu0
    %v1381 = vadd.f32 %v1149, %v1380
    %v1382 = vpop.f32.mrf.mxu0
    %1383 = vmatprep.mubr.f32.mxu0 0.0
    %1384 = vmatmul.mubr.f32.gmra.mxu0 %v528
    %v1385 = vpop.f32.mrf.mxu0
    %v1386 = vadd.f32 %v1154, %v1385
    %v1387 = vpop.f32.mrf.mxu0
    %1388 = vmatprep.mubr.f32.mxu0 0.0
    %1389 = vmatmul.mubr.f32.gmra.mxu0 %v531
    %v1390 = vpop.f32.mrf.mxu0
    %v1391 = vadd.f32 %v1159, %v1390
    %v1392 = vpop.f32.mrf.mxu0
    %1393 = vmatprep.mubr.f32.mxu0 0.0
    %1394 = vmatmul.mubr.f32.gmra.mxu0 %v534
    %v1395 = vpop.f32.mrf.mxu0
    %v1396 = vadd.f32 %v1164, %v1395
    %v1397 = vpop.f32.mrf.mxu0
    %1398 = vmatprep.mubr.f32.mxu0 0.0
    %1399 = vmatmul.mubr.f32.gmra.mxu0 %v537
    %v1400 = vpop.f32.mrf.mxu0
    %v1401 = vadd.f32 %v1169, %v1400
    %v1402 = vpop.f32.mrf.mxu0
    %1403 = vmatprep.mubr.f32.mxu0 0.0
    %1404 = vmatmul.mubr.f32.gmra.mxu0 %v540
    %v1405 = vpop.f32.mrf.mxu0
    %v1406 = vadd.f32 %v1174, %v1405
    %v1407 = vpop.f32.mrf.mxu0
    %1408 = vdwg.mxu0
    %v1409 = vld [vmem:[%s5] sm:$0xff]
    %v1410 = vld [vmem:[%s5 + $0x8] sm:$0xff]
    %v1411 = vld [vmem:[%s5 + $0x10] sm:$0xff]
    %v1412 = vld [vmem:[%s5 + $0x18] sm:$0x1]
    %v1414 = vsel %vm217, %v1412, 0
    %1416 = vmatprep.subr.mxu0 0.0
    %1417 = vmatpush1.msra.mxu0 0.0
    %1418 = vmatprep.subr.mxu0 0.0
    %1419 = vmatpush1.msra.mxu0 0.0
    %1420 = vmatprep.subr.mxu0 0.0
    %1421 = vmatpush1.msra.mxu0 0.0
    %1422 = vmatprep.subr.mxu0 0.0
    %1423 = vmatpush1.msra.mxu0 0.0
    %1424 = vmatprep.subr.mxu0 0.0
    %1425 = vmatpush1.msra.mxu0 0.0
    %1426 = vmatprep.subr.mxu0 0.0
    %1427 = vmatpush1.msra.mxu0 0.0
    %1428 = vmatprep.subr.mxu0 0.0
    %1429 = vmatpush1.msra.mxu0 0.0
    %1430 = vmatprep.subr.mxu0 0.0
    %1431 = vmatpush1.msra.mxu0 0.0
    %1432 = vmatprep.subr.mxu0 0.0
    %1433 = vmatpush1.msra.mxu0 0.0
    %1434 = vmatprep.subr.mxu0 0.0
    %1435 = vmatpush1.msra.mxu0 0.0
    %1436 = vmatprep.subr.mxu0 0.0
    %1437 = vmatpush1.msra.mxu0 0.0
    %1438 = vmatprep.subr.mxu0 0.0
    %1439 = vmatpush1.msra.mxu0 0.0
    %1440 = vmatprep.subr.mxu0 0.0
    %1441 = vmatpush1.msra.mxu0 %v1414
    %1442 = vmatprep.subr.mxu0 0.0
    %1443 = vmatpush1.msra.mxu0 %v1411
    %1444 = vmatprep.subr.mxu0 0.0
    %1445 = vmatpush1.msra.mxu0 %v1410
    %1446 = vmatprep.subr.mxu0 0.0
    %1447 = vmatpush1.msra.mxu0 %v1409
    %1448 = vmatprep.subr.mxu0 0.0
    %1449 = vmatpush2.msra.mxu0 0.0
    %1450 = vmatprep.subr.mxu0 0.0
    %1451 = vmatpush2.msra.mxu0 0.0
    %1452 = vmatprep.subr.mxu0 0.0
    %1453 = vmatpush2.msra.mxu0 0.0
    %1454 = vmatprep.subr.mxu0 0.0
    %1455 = vmatpush2.msra.mxu0 0.0
    %1456 = vmatprep.subr.mxu0 0.0
    %1457 = vmatpush2.msra.mxu0 0.0
    %1458 = vmatprep.subr.mxu0 0.0
    %1459 = vmatpush2.msra.mxu0 0.0
    %1460 = vmatprep.subr.mxu0 0.0
    %1461 = vmatpush2.msra.mxu0 0.0
    %1462 = vmatprep.subr.mxu0 0.0
    %1463 = vmatpush2.msra.mxu0 0.0
    %1464 = vmatprep.subr.mxu0 0.0
    %1465 = vmatpush2.msra.mxu0 0.0
    %1466 = vmatprep.subr.mxu0 0.0
    %1467 = vmatpush2.msra.mxu0 0.0
    %1468 = vmatprep.subr.mxu0 0.0
    %1469 = vmatpush2.msra.mxu0 0.0
    %1470 = vmatprep.subr.mxu0 0.0
    %1471 = vmatpush2.msra.mxu0 0.0
    %1472 = vmatprep.subr.mxu0 0.0
    %1473 = vmatpush2.msra.mxu0 0.0
    %1474 = vmatprep.subr.mxu0 0.0
    %1475 = vmatpush2.msra.mxu0 0.0
    %1476 = vmatprep.subr.mxu0 0.0
    %1477 = vmatpush2.msra.mxu0 0.0
    %1478 = vmatprep.subr.mxu0 0.0
    %1479 = vmatpush2.msra.mxu0 0.0
    %1480 = vmatprep.mubr.f32.mxu0 0.0
    %1481 = vmatmul.mubr.f32.gmra.mxu0 %v447
    %v1482 = vpop.f32.mrf.mxu0
    %v1483 = vadd.f32 %v1019, %v1482
    %v1484 = vpop.f32.mrf.mxu0
    %1485 = vmatprep.mubr.f32.mxu0 0.0
    %1486 = vmatmul.mubr.f32.gmra.mxu0 %v450
    %v1487 = vpop.f32.mrf.mxu0
    %v1488 = vadd.f32 %v1024, %v1487
    %v1489 = vpop.f32.mrf.mxu0
    %1490 = vmatprep.mubr.f32.mxu0 0.0
    %1491 = vmatmul.mubr.f32.gmra.mxu0 %v453
    %v1492 = vpop.f32.mrf.mxu0
    %v1493 = vadd.f32 %v1029, %v1492
    %v1494 = vpop.f32.mrf.mxu0
    %1495 = vmatprep.mubr.f32.mxu0 0.0
    %1496 = vmatmul.mubr.f32.gmra.mxu0 %v456
    %v1497 = vpop.f32.mrf.mxu0
    %v1498 = vadd.f32 %v1034, %v1497
    %v1499 = vpop.f32.mrf.mxu0
    %1500 = vmatprep.mubr.f32.mxu0 0.0
    %1501 = vmatmul.mubr.f32.gmra.mxu0 %v459
    %v1502 = vpop.f32.mrf.mxu0
    %v1503 = vadd.f32 %v1039, %v1502
    %v1504 = vpop.f32.mrf.mxu0
    %1505 = vmatprep.mubr.f32.mxu0 0.0
    %1506 = vmatmul.mubr.f32.gmra.mxu0 %v462
    %v1507 = vpop.f32.mrf.mxu0
    %v1508 = vadd.f32 %v1044, %v1507
    %v1509 = vpop.f32.mrf.mxu0
    %1510 = vmatprep.mubr.f32.mxu0 0.0
    %1511 = vmatmul.mubr.f32.gmra.mxu0 %v465
    %v1512 = vpop.f32.mrf.mxu0
    %v1513 = vadd.f32 %v1049, %v1512
    %v1514 = vpop.f32.mrf.mxu0
    %1515 = vmatprep.mubr.f32.mxu0 0.0
    %1516 = vmatmul.mubr.f32.gmra.mxu0 %v468
    %v1517 = vpop.f32.mrf.mxu0
    %v1518 = vadd.f32 %v1054, %v1517
    %v1519 = vpop.f32.mrf.mxu0
    %1520 = vmatprep.mubr.f32.mxu0 0.0
    %1521 = vmatmul.mubr.f32.gmra.mxu0 %v471
    %v1522 = vpop.f32.mrf.mxu0
    %v1523 = vadd.f32 %v1059, %v1522
    %v1524 = vpop.f32.mrf.mxu0
    %1525 = vmatprep.mubr.f32.mxu0 0.0
    %1526 = vmatmul.mubr.f32.gmra.mxu0 %v474
    %v1527 = vpop.f32.mrf.mxu0
    %v1528 = vadd.f32 %v1064, %v1527
    %v1529 = vpop.f32.mrf.mxu0
    %1530 = vmatprep.mubr.f32.mxu0 0.0
    %1531 = vmatmul.mubr.f32.gmra.mxu0 %v477
    %v1532 = vpop.f32.mrf.mxu0
    %v1533 = vadd.f32 %v1069, %v1532
    %v1534 = vpop.f32.mrf.mxu0
    %1535 = vmatprep.mubr.f32.mxu0 0.0
    %1536 = vmatmul.mubr.f32.gmra.mxu0 %v480
    %v1537 = vpop.f32.mrf.mxu0
    %v1538 = vadd.f32 %v1074, %v1537
    %v1539 = vpop.f32.mrf.mxu0
    %1540 = vmatprep.mubr.f32.mxu0 0.0
    %1541 = vmatmul.mubr.f32.gmra.mxu0 %v483
    %v1542 = vpop.f32.mrf.mxu0
    %v1543 = vadd.f32 %v1079, %v1542
    %v1544 = vpop.f32.mrf.mxu0
    %1545 = vmatprep.mubr.f32.mxu0 0.0
    %1546 = vmatmul.mubr.f32.gmra.mxu0 %v486
    %v1547 = vpop.f32.mrf.mxu0
    %v1548 = vadd.f32 %v1084, %v1547
    %v1549 = vpop.f32.mrf.mxu0
    %1550 = vmatprep.mubr.f32.mxu0 0.0
    %1551 = vmatmul.mubr.f32.gmra.mxu0 %v489
    %v1552 = vpop.f32.mrf.mxu0
    %v1553 = vadd.f32 %v1089, %v1552
    %v1554 = vpop.f32.mrf.mxu0
    %1555 = vmatprep.mubr.f32.mxu0 0.0
    %1556 = vmatmul.mubr.f32.gmra.mxu0 %v492
    %v1557 = vpop.f32.mrf.mxu0
    %v1558 = vadd.f32 %v1094, %v1557
    %v1559 = vpop.f32.mrf.mxu0
    %1560 = vmatprep.mubr.f32.mxu0 0.0
    %1561 = vmatmul.mubr.f32.gmra.mxu0 %v495
    %v1562 = vpop.f32.mrf.mxu0
    %v1563 = vadd.f32 %v1099, %v1562
    %v1564 = vpop.f32.mrf.mxu0
    %1565 = vmatprep.mubr.f32.mxu0 0.0
    %1566 = vmatmul.mubr.f32.gmra.mxu0 %v498
    %v1567 = vpop.f32.mrf.mxu0
    %v1568 = vadd.f32 %v1104, %v1567
    %v1569 = vpop.f32.mrf.mxu0
    %1570 = vmatprep.mubr.f32.mxu0 0.0
    %1571 = vmatmul.mubr.f32.gmra.mxu0 %v501
    %v1572 = vpop.f32.mrf.mxu0
    %v1573 = vadd.f32 %v1109, %v1572
    %v1574 = vpop.f32.mrf.mxu0
    %1575 = vmatprep.mubr.f32.mxu0 0.0
    %1576 = vmatmul.mubr.f32.gmra.mxu0 %v504
    %v1577 = vpop.f32.mrf.mxu0
    %v1578 = vadd.f32 %v1114, %v1577
    %v1579 = vpop.f32.mrf.mxu0
    %1580 = vmatprep.mubr.f32.mxu0 0.0
    %1581 = vmatmul.mubr.f32.gmra.mxu0 %v507
    %v1582 = vpop.f32.mrf.mxu0
    %v1583 = vadd.f32 %v1119, %v1582
    %v1584 = vpop.f32.mrf.mxu0
    %1585 = vmatprep.mubr.f32.mxu0 0.0
    %1586 = vmatmul.mubr.f32.gmra.mxu0 %v510
    %v1587 = vpop.f32.mrf.mxu0
    %v1588 = vadd.f32 %v1124, %v1587
    %v1589 = vpop.f32.mrf.mxu0
    %1590 = vmatprep.mubr.f32.mxu0 0.0
    %1591 = vmatmul.mubr.f32.gmra.mxu0 %v513
    %v1592 = vpop.f32.mrf.mxu0
    %v1593 = vadd.f32 %v1129, %v1592
    %v1594 = vpop.f32.mrf.mxu0
    %1595 = vmatprep.mubr.f32.mxu0 0.0
    %1596 = vmatmul.mubr.f32.gmra.mxu0 %v516
    %v1597 = vpop.f32.mrf.mxu0
    %v1598 = vadd.f32 %v1134, %v1597
    %v1599 = vpop.f32.mrf.mxu0
    %1600 = vmatprep.mubr.f32.mxu0 0.0
    %1601 = vmatmul.mubr.f32.gmra.mxu0 %v519
    %v1602 = vpop.f32.mrf.mxu0
    %v1603 = vadd.f32 %v1139, %v1602
    %v1604 = vpop.f32.mrf.mxu0
    %1605 = vmatprep.mubr.f32.mxu0 0.0
    %1606 = vmatmul.mubr.f32.gmra.mxu0 %v522
    %v1607 = vpop.f32.mrf.mxu0
    %v1608 = vadd.f32 %v1144, %v1607
    %v1609 = vpop.f32.mrf.mxu0
    %1610 = vmatprep.mubr.f32.mxu0 0.0
    %1611 = vmatmul.mubr.f32.gmra.mxu0 %v525
    %v1612 = vpop.f32.mrf.mxu0
    %v1613 = vadd.f32 %v1149, %v1612
    %v1614 = vpop.f32.mrf.mxu0
    %1615 = vmatprep.mubr.f32.mxu0 0.0
    %1616 = vmatmul.mubr.f32.gmra.mxu0 %v528
    %v1617 = vpop.f32.mrf.mxu0
    %v1618 = vadd.f32 %v1154, %v1617
    %v1619 = vpop.f32.mrf.mxu0
    %1620 = vmatprep.mubr.f32.mxu0 0.0
    %1621 = vmatmul.mubr.f32.gmra.mxu0 %v531
    %v1622 = vpop.f32.mrf.mxu0
    %v1623 = vadd.f32 %v1159, %v1622
    %v1624 = vpop.f32.mrf.mxu0
    %1625 = vmatprep.mubr.f32.mxu0 0.0
    %1626 = vmatmul.mubr.f32.gmra.mxu0 %v534
    %v1627 = vpop.f32.mrf.mxu0
    %v1628 = vadd.f32 %v1164, %v1627
    %v1629 = vpop.f32.mrf.mxu0
    %1630 = vmatprep.mubr.f32.mxu0 0.0
    %1631 = vmatmul.mubr.f32.gmra.mxu0 %v537
    %v1632 = vpop.f32.mrf.mxu0
    %v1633 = vadd.f32 %v1169, %v1632
    %v1634 = vpop.f32.mrf.mxu0
    %1635 = vmatprep.mubr.f32.mxu0 0.0
    %1636 = vmatmul.mubr.f32.gmra.mxu0 %v540
    %v1637 = vpop.f32.mrf.mxu0
    %v1638 = vadd.f32 %v1174, %v1637
    %v1639 = vpop.f32.mrf.mxu0
    %1640 = vdwg.mxu0
    %v1641 = vmax.f32 %v1251, 0.0
    %v1642 = vmax.f32 %v1256, 0.0
    %v1643 = vmax.f32 %v1261, 0.0
    %v1644 = vmax.f32 %v1266, 0.0
    %v1645 = vmax.f32 %v1271, 0.0
    %v1646 = vmax.f32 %v1276, 0.0
    %v1647 = vmax.f32 %v1281, 0.0
    %v1648 = vmax.f32 %v1286, 0.0
    %v1649 = vmax.f32 %v1291, 0.0
    %v1650 = vmax.f32 %v1296, 0.0
    %v1651 = vmax.f32 %v1301, 0.0
    %v1652 = vmax.f32 %v1306, 0.0
    %v1653 = vmax.f32 %v1311, 0.0
    %v1654 = vmax.f32 %v1316, 0.0
    %v1655 = vmax.f32 %v1321, 0.0
    %v1656 = vmax.f32 %v1326, 0.0
    %v1657 = vmax.f32 %v1331, 0.0
    %v1658 = vmax.f32 %v1336, 0.0
    %v1659 = vmax.f32 %v1341, 0.0
    %v1660 = vmax.f32 %v1346, 0.0
    %v1661 = vmax.f32 %v1351, 0.0
    %v1662 = vmax.f32 %v1356, 0.0
    %v1663 = vmax.f32 %v1361, 0.0
    %v1664 = vmax.f32 %v1366, 0.0
    %v1665 = vmax.f32 %v1371, 0.0
    %v1666 = vmax.f32 %v1376, 0.0
    %v1667 = vmax.f32 %v1381, 0.0
    %v1668 = vmax.f32 %v1386, 0.0
    %v1669 = vmax.f32 %v1391, 0.0
    %v1670 = vmax.f32 %v1396, 0.0
    %v1671 = vmax.f32 %v1401, 0.0
    %v1672 = vmax.f32 %v1406, 0.0
    %v1673 = vmax.f32 %v1483, 0.0
    %v1674 = vmax.f32 %v1488, 0.0
    %v1675 = vmax.f32 %v1493, 0.0
    %v1676 = vmax.f32 %v1498, 0.0
    %v1677 = vmax.f32 %v1503, 0.0
    %v1678 = vmax.f32 %v1508, 0.0
    %v1679 = vmax.f32 %v1513, 0.0
    %v1680 = vmax.f32 %v1518, 0.0
    %v1681 = vmax.f32 %v1523, 0.0
    %v1682 = vmax.f32 %v1528, 0.0
    %v1683 = vmax.f32 %v1533, 0.0
    %v1684 = vmax.f32 %v1538, 0.0
    %v1685 = vmax.f32 %v1543, 0.0
    %v1686 = vmax.f32 %v1548, 0.0
    %v1687 = vmax.f32 %v1553, 0.0
    %v1688 = vmax.f32 %v1558, 0.0
    %v1689 = vmax.f32 %v1563, 0.0
    %v1690 = vmax.f32 %v1568, 0.0
    %v1691 = vmax.f32 %v1573, 0.0
    %v1692 = vmax.f32 %v1578, 0.0
    %v1693 = vmax.f32 %v1583, 0.0
    %v1694 = vmax.f32 %v1588, 0.0
    %v1695 = vmax.f32 %v1593, 0.0
    %v1696 = vmax.f32 %v1598, 0.0
    %v1697 = vmax.f32 %v1603, 0.0
    %v1698 = vmax.f32 %v1608, 0.0
    %v1699 = vmax.f32 %v1613, 0.0
    %v1700 = vmax.f32 %v1618, 0.0
    %v1701 = vmax.f32 %v1623, 0.0
    %v1702 = vmax.f32 %v1628, 0.0
    %v1703 = vmax.f32 %v1633, 0.0
    %v1704 = vmax.f32 %v1638, 0.0
    %v1705 = vld [vmem:[%s8] sm:$0xff]
    %v1706 = vld [vmem:[%s8 + $0x8] sm:$0xff]
    %v1707 = vld [vmem:[%s8 + $0x10] sm:$0xff]
    %v1708 = vld [vmem:[%s8 + $0x18] sm:$0xff]
    %v1709 = vld [vmem:[%s9] sm:$0x1]
    %v1711 = vlaneseq
    %v1712 = vshrl.u32 %v1711, 7
    %v1713 = vsub.s32 0, %v1712
    %v1714 = vrot.slane %v1709, %v1713
    %vm1716 = vcmask 261120
    %v1718 = vsel %vm1716, %v1641, 0
    %v1721 = vsel %vm1716, %v1642, 0
    %v1724 = vsel %vm1716, %v1643, 0
    %v1727 = vsel %vm1716, %v1644, 0
    %v1730 = vsel %vm1716, %v1645, 0
    %v1733 = vsel %vm1716, %v1646, 0
    %v1736 = vsel %vm1716, %v1647, 0
    %v1739 = vsel %vm1716, %v1648, 0
    %v1742 = vsel %vm1716, %v1649, 0
    %v1745 = vsel %vm1716, %v1650, 0
    %v1748 = vsel %vm1716, %v1651, 0
    %v1751 = vsel %vm1716, %v1652, 0
    %v1754 = vsel %vm1716, %v1653, 0
    %v1757 = vsel %vm1716, %v1654, 0
    %v1760 = vsel %vm1716, %v1655, 0
    %v1763 = vsel %vm1716, %v1656, 0
    %v1766 = vsel %vm1716, %v1657, 0
    %v1769 = vsel %vm1716, %v1658, 0
    %v1772 = vsel %vm1716, %v1659, 0
    %v1775 = vsel %vm1716, %v1660, 0
    %v1778 = vsel %vm1716, %v1661, 0
    %v1781 = vsel %vm1716, %v1662, 0
    %v1784 = vsel %vm1716, %v1663, 0
    %v1787 = vsel %vm1716, %v1664, 0
    %v1790 = vsel %vm1716, %v1665, 0
    %v1793 = vsel %vm1716, %v1666, 0
    %v1796 = vsel %vm1716, %v1667, 0
    %v1799 = vsel %vm1716, %v1668, 0
    %v1802 = vsel %vm1716, %v1669, 0
    %v1805 = vsel %vm1716, %v1670, 0
    %v1808 = vsel %vm1716, %v1671, 0
    %v1811 = vsel %vm1716, %v1672, 0
    %v1814 = vsel %vm1716, %v1673, 0
    %v1817 = vsel %vm1716, %v1674, 0
    %v1820 = vsel %vm1716, %v1675, 0
    %v1823 = vsel %vm1716, %v1676, 0
    %v1826 = vsel %vm1716, %v1677, 0
    %v1829 = vsel %vm1716, %v1678, 0
    %v1832 = vsel %vm1716, %v1679, 0
    %v1835 = vsel %vm1716, %v1680, 0
    %v1838 = vsel %vm1716, %v1681, 0
    %v1841 = vsel %vm1716, %v1682, 0
    %v1844 = vsel %vm1716, %v1683, 0
    %v1847 = vsel %vm1716, %v1684, 0
    %v1850 = vsel %vm1716, %v1685, 0
    %v1853 = vsel %vm1716, %v1686, 0
    %v1856 = vsel %vm1716, %v1687, 0
    %v1859 = vsel %vm1716, %v1688, 0
    %v1862 = vsel %vm1716, %v1689, 0
    %v1865 = vsel %vm1716, %v1690, 0
    %v1868 = vsel %vm1716, %v1691, 0
    %v1871 = vsel %vm1716, %v1692, 0
    %v1874 = vsel %vm1716, %v1693, 0
    %v1877 = vsel %vm1716, %v1694, 0
    %v1880 = vsel %vm1716, %v1695, 0
    %v1883 = vsel %vm1716, %v1696, 0
    %v1886 = vsel %vm1716, %v1697, 0
    %v1889 = vsel %vm1716, %v1698, 0
    %v1892 = vsel %vm1716, %v1699, 0
    %v1895 = vsel %vm1716, %v1700, 0
    %v1898 = vsel %vm1716, %v1701, 0
    %v1901 = vsel %vm1716, %v1702, 0
    %v1904 = vsel %vm1716, %v1703, 0
    %v1907 = vsel %vm1716, %v1704, 0
    %1909 = vmatprep.subr.mxu0 0.0
    %1910 = vmatpush1.msra.mxu0 0.0
    %1911 = vmatprep.subr.mxu0 0.0
    %1912 = vmatpush1.msra.mxu0 0.0
    %1913 = vmatprep.subr.mxu0 0.0
    %1914 = vmatpush1.msra.mxu0 0.0
    %1915 = vmatprep.subr.mxu0 0.0
    %1916 = vmatpush1.msra.mxu0 0.0
    %1917 = vmatprep.subr.mxu0 0.0
    %1918 = vmatpush1.msra.mxu0 0.0
    %1919 = vmatprep.subr.mxu0 0.0
    %1920 = vmatpush1.msra.mxu0 0.0
    %1921 = vmatprep.subr.mxu0 0.0
    %1922 = vmatpush1.msra.mxu0 0.0
    %1923 = vmatprep.subr.mxu0 0.0
    %1924 = vmatpush1.msra.mxu0 0.0
    %1925 = vmatprep.subr.mxu0 0.0
    %1926 = vmatpush1.msra.mxu0 0.0
    %1927 = vmatprep.subr.mxu0 0.0
    %1928 = vmatpush1.msra.mxu0 0.0
    %1929 = vmatprep.subr.mxu0 0.0
    %1930 = vmatpush1.msra.mxu0 0.0
    %1931 = vmatprep.subr.mxu0 0.0
    %1932 = vmatpush1.msra.mxu0 0.0
    %1933 = vmatprep.subr.mxu0 0.0
    %1934 = vmatpush1.msra.mxu0 %v1708
    %1935 = vmatprep.subr.mxu0 0.0
    %1936 = vmatpush1.msra.mxu0 %v1707
    %1937 = vmatprep.subr.mxu0 0.0
    %1938 = vmatpush1.msra.mxu0 %v1706
    %1939 = vmatprep.subr.mxu0 0.0
    %1940 = vmatpush1.msra.mxu0 %v1705
    %1941 = vmatprep.subr.mxu0 0.0
    %1942 = vmatpush2.msra.mxu0 0.0
    %1943 = vmatprep.subr.mxu0 0.0
    %1944 = vmatpush2.msra.mxu0 0.0
    %1945 = vmatprep.subr.mxu0 0.0
    %1946 = vmatpush2.msra.mxu0 0.0
    %1947 = vmatprep.subr.mxu0 0.0
    %1948 = vmatpush2.msra.mxu0 0.0
    %1949 = vmatprep.subr.mxu0 0.0
    %1950 = vmatpush2.msra.mxu0 0.0
    %1951 = vmatprep.subr.mxu0 0.0
    %1952 = vmatpush2.msra.mxu0 0.0
    %1953 = vmatprep.subr.mxu0 0.0
    %1954 = vmatpush2.msra.mxu0 0.0
    %1955 = vmatprep.subr.mxu0 0.0
    %1956 = vmatpush2.msra.mxu0 0.0
    %1957 = vmatprep.subr.mxu0 0.0
    %1958 = vmatpush2.msra.mxu0 0.0
    %1959 = vmatprep.subr.mxu0 0.0
    %1960 = vmatpush2.msra.mxu0 0.0
    %1961 = vmatprep.subr.mxu0 0.0
    %1962 = vmatpush2.msra.mxu0 0.0
    %1963 = vmatprep.subr.mxu0 0.0
    %1964 = vmatpush2.msra.mxu0 0.0
    %1965 = vmatprep.subr.mxu0 0.0
    %1966 = vmatpush2.msra.mxu0 0.0
    %1967 = vmatprep.subr.mxu0 0.0
    %1968 = vmatpush2.msra.mxu0 0.0
    %1969 = vmatprep.subr.mxu0 0.0
    %1970 = vmatpush2.msra.mxu0 0.0
    %1971 = vmatprep.subr.mxu0 0.0
    %1972 = vmatpush2.msra.mxu0 0.0
    %1973 = vmatprep.mubr.f32.mxu0 0.0
    %1974 = vmatmul.mubr.f32.gmra.mxu0 %v1718
    %v1975 = vpop.f32.mrf.mxu0
    %v1976 = vadd.f32 %v1714, %v1975
    %v1977 = vpop.f32.mrf.mxu0
    %1978 = vmatprep.mubr.f32.mxu0 0.0
    %1979 = vmatmul.mubr.f32.gmra.mxu0 %v1721
    %v1980 = vpop.f32.mrf.mxu0
    %v1981 = vadd.f32 %v1714, %v1980
    %v1982 = vpop.f32.mrf.mxu0
    %1983 = vmatprep.mubr.f32.mxu0 0.0
    %1984 = vmatmul.mubr.f32.gmra.mxu0 %v1724
    %v1985 = vpop.f32.mrf.mxu0
    %v1986 = vadd.f32 %v1714, %v1985
    %v1987 = vpop.f32.mrf.mxu0
    %1988 = vmatprep.mubr.f32.mxu0 0.0
    %1989 = vmatmul.mubr.f32.gmra.mxu0 %v1727
    %v1990 = vpop.f32.mrf.mxu0
    %v1991 = vadd.f32 %v1714, %v1990
    %v1992 = vpop.f32.mrf.mxu0
    %1993 = vmatprep.mubr.f32.mxu0 0.0
    %1994 = vmatmul.mubr.f32.gmra.mxu0 %v1730
    %v1995 = vpop.f32.mrf.mxu0
    %v1996 = vadd.f32 %v1714, %v1995
    %v1997 = vpop.f32.mrf.mxu0
    %1998 = vmatprep.mubr.f32.mxu0 0.0
    %1999 = vmatmul.mubr.f32.gmra.mxu0 %v1733
    %v2000 = vpop.f32.mrf.mxu0
    %v2001 = vadd.f32 %v1714, %v2000
    %v2002 = vpop.f32.mrf.mxu0
    %2003 = vmatprep.mubr.f32.mxu0 0.0
    %2004 = vmatmul.mubr.f32.gmra.mxu0 %v1736
    %v2005 = vpop.f32.mrf.mxu0
    %v2006 = vadd.f32 %v1714, %v2005
    %v2007 = vpop.f32.mrf.mxu0
    %2008 = vmatprep.mubr.f32.mxu0 0.0
    %2009 = vmatmul.mubr.f32.gmra.mxu0 %v1739
    %v2010 = vpop.f32.mrf.mxu0
    %v2011 = vadd.f32 %v1714, %v2010
    %v2012 = vpop.f32.mrf.mxu0
    %2013 = vmatprep.mubr.f32.mxu0 0.0
    %2014 = vmatmul.mubr.f32.gmra.mxu0 %v1742
    %v2015 = vpop.f32.mrf.mxu0
    %v2016 = vadd.f32 %v1714, %v2015
    %v2017 = vpop.f32.mrf.mxu0
    %2018 = vmatprep.mubr.f32.mxu0 0.0
    %2019 = vmatmul.mubr.f32.gmra.mxu0 %v1745
    %v2020 = vpop.f32.mrf.mxu0
    %v2021 = vadd.f32 %v1714, %v2020
    %v2022 = vpop.f32.mrf.mxu0
    %2023 = vmatprep.mubr.f32.mxu0 0.0
    %2024 = vmatmul.mubr.f32.gmra.mxu0 %v1748
    %v2025 = vpop.f32.mrf.mxu0
    %v2026 = vadd.f32 %v1714, %v2025
    %v2027 = vpop.f32.mrf.mxu0
    %2028 = vmatprep.mubr.f32.mxu0 0.0
    %2029 = vmatmul.mubr.f32.gmra.mxu0 %v1751
    %v2030 = vpop.f32.mrf.mxu0
    %v2031 = vadd.f32 %v1714, %v2030
    %v2032 = vpop.f32.mrf.mxu0
    %2033 = vmatprep.mubr.f32.mxu0 0.0
    %2034 = vmatmul.mubr.f32.gmra.mxu0 %v1754
    %v2035 = vpop.f32.mrf.mxu0
    %v2036 = vadd.f32 %v1714, %v2035
    %v2037 = vpop.f32.mrf.mxu0
    %2038 = vmatprep.mubr.f32.mxu0 0.0
    %2039 = vmatmul.mubr.f32.gmra.mxu0 %v1757
    %v2040 = vpop.f32.mrf.mxu0
    %v2041 = vadd.f32 %v1714, %v2040
    %v2042 = vpop.f32.mrf.mxu0
    %2043 = vmatprep.mubr.f32.mxu0 0.0
    %2044 = vmatmul.mubr.f32.gmra.mxu0 %v1760
    %v2045 = vpop.f32.mrf.mxu0
    %v2046 = vadd.f32 %v1714, %v2045
    %v2047 = vpop.f32.mrf.mxu0
    %2048 = vmatprep.mubr.f32.mxu0 0.0
    %2049 = vmatmul.mubr.f32.gmra.mxu0 %v1763
    %v2050 = vpop.f32.mrf.mxu0
    %v2051 = vadd.f32 %v1714, %v2050
    %v2052 = vpop.f32.mrf.mxu0
    %2053 = vmatprep.mubr.f32.mxu0 0.0
    %2054 = vmatmul.mubr.f32.gmra.mxu0 %v1766
    %v2055 = vpop.f32.mrf.mxu0
    %v2056 = vadd.f32 %v1714, %v2055
    %v2057 = vpop.f32.mrf.mxu0
    %2058 = vmatprep.mubr.f32.mxu0 0.0
    %2059 = vmatmul.mubr.f32.gmra.mxu0 %v1769
    %v2060 = vpop.f32.mrf.mxu0
    %v2061 = vadd.f32 %v1714, %v2060
    %v2062 = vpop.f32.mrf.mxu0
    %2063 = vmatprep.mubr.f32.mxu0 0.0
    %2064 = vmatmul.mubr.f32.gmra.mxu0 %v1772
    %v2065 = vpop.f32.mrf.mxu0
    %v2066 = vadd.f32 %v1714, %v2065
    %v2067 = vpop.f32.mrf.mxu0
    %2068 = vmatprep.mubr.f32.mxu0 0.0
    %2069 = vmatmul.mubr.f32.gmra.mxu0 %v1775
    %v2070 = vpop.f32.mrf.mxu0
    %v2071 = vadd.f32 %v1714, %v2070
    %v2072 = vpop.f32.mrf.mxu0
    %2073 = vmatprep.mubr.f32.mxu0 0.0
    %2074 = vmatmul.mubr.f32.gmra.mxu0 %v1778
    %v2075 = vpop.f32.mrf.mxu0
    %v2076 = vadd.f32 %v1714, %v2075
    %v2077 = vpop.f32.mrf.mxu0
    %2078 = vmatprep.mubr.f32.mxu0 0.0
    %2079 = vmatmul.mubr.f32.gmra.mxu0 %v1781
    %v2080 = vpop.f32.mrf.mxu0
    %v2081 = vadd.f32 %v1714, %v2080
    %v2082 = vpop.f32.mrf.mxu0
    %2083 = vmatprep.mubr.f32.mxu0 0.0
    %2084 = vmatmul.mubr.f32.gmra.mxu0 %v1784
    %v2085 = vpop.f32.mrf.mxu0
    %v2086 = vadd.f32 %v1714, %v2085
    %v2087 = vpop.f32.mrf.mxu0
    %2088 = vmatprep.mubr.f32.mxu0 0.0
    %2089 = vmatmul.mubr.f32.gmra.mxu0 %v1787
    %v2090 = vpop.f32.mrf.mxu0
    %v2091 = vadd.f32 %v1714, %v2090
    %v2092 = vpop.f32.mrf.mxu0
    %2093 = vmatprep.mubr.f32.mxu0 0.0
    %2094 = vmatmul.mubr.f32.gmra.mxu0 %v1790
    %v2095 = vpop.f32.mrf.mxu0
    %v2096 = vadd.f32 %v1714, %v2095
    %v2097 = vpop.f32.mrf.mxu0
    %2098 = vmatprep.mubr.f32.mxu0 0.0
    %2099 = vmatmul.mubr.f32.gmra.mxu0 %v1793
    %v2100 = vpop.f32.mrf.mxu0
    %v2101 = vadd.f32 %v1714, %v2100
    %v2102 = vpop.f32.mrf.mxu0
    %2103 = vmatprep.mubr.f32.mxu0 0.0
    %2104 = vmatmul.mubr.f32.gmra.mxu0 %v1796
    %v2105 = vpop.f32.mrf.mxu0
    %v2106 = vadd.f32 %v1714, %v2105
    %v2107 = vpop.f32.mrf.mxu0
    %2108 = vmatprep.mubr.f32.mxu0 0.0
    %2109 = vmatmul.mubr.f32.gmra.mxu0 %v1799
    %v2110 = vpop.f32.mrf.mxu0
    %v2111 = vadd.f32 %v1714, %v2110
    %v2112 = vpop.f32.mrf.mxu0
    %2113 = vmatprep.mubr.f32.mxu0 0.0
    %2114 = vmatmul.mubr.f32.gmra.mxu0 %v1802
    %v2115 = vpop.f32.mrf.mxu0
    %v2116 = vadd.f32 %v1714, %v2115
    %v2117 = vpop.f32.mrf.mxu0
    %2118 = vmatprep.mubr.f32.mxu0 0.0
    %2119 = vmatmul.mubr.f32.gmra.mxu0 %v1805
    %v2120 = vpop.f32.mrf.mxu0
    %v2121 = vadd.f32 %v1714, %v2120
    %v2122 = vpop.f32.mrf.mxu0
    %2123 = vmatprep.mubr.f32.mxu0 0.0
    %2124 = vmatmul.mubr.f32.gmra.mxu0 %v1808
    %v2125 = vpop.f32.mrf.mxu0
    %v2126 = vadd.f32 %v1714, %v2125
    %v2127 = vpop.f32.mrf.mxu0
    %2128 = vmatprep.mubr.f32.mxu0 0.0
    %2129 = vmatmul.mubr.f32.gmra.mxu0 %v1811
    %v2130 = vpop.f32.mrf.mxu0
    %v2131 = vadd.f32 %v1714, %v2130
    %v2132 = vpop.f32.mrf.mxu0
    %2133 = vmatprep.mubr.f32.mxu0 0.0
    %2134 = vmatmul.mubr.f32.gmra.mxu0 %v1814
    %v2135 = vpop.f32.mrf.mxu0
    %v2136 = vadd.f32 %v1714, %v2135
    %v2137 = vpop.f32.mrf.mxu0
    %2138 = vmatprep.mubr.f32.mxu0 0.0
    %2139 = vmatmul.mubr.f32.gmra.mxu0 %v1817
    %v2140 = vpop.f32.mrf.mxu0
    %v2141 = vadd.f32 %v1714, %v2140
    %v2142 = vpop.f32.mrf.mxu0
    %2143 = vmatprep.mubr.f32.mxu0 0.0
    %2144 = vmatmul.mubr.f32.gmra.mxu0 %v1820
    %v2145 = vpop.f32.mrf.mxu0
    %v2146 = vadd.f32 %v1714, %v2145
    %v2147 = vpop.f32.mrf.mxu0
    %2148 = vmatprep.mubr.f32.mxu0 0.0
    %2149 = vmatmul.mubr.f32.gmra.mxu0 %v1823
    %v2150 = vpop.f32.mrf.mxu0
    %v2151 = vadd.f32 %v1714, %v2150
    %v2152 = vpop.f32.mrf.mxu0
    %2153 = vmatprep.mubr.f32.mxu0 0.0
    %2154 = vmatmul.mubr.f32.gmra.mxu0 %v1826
    %v2155 = vpop.f32.mrf.mxu0
    %v2156 = vadd.f32 %v1714, %v2155
    %v2157 = vpop.f32.mrf.mxu0
    %2158 = vmatprep.mubr.f32.mxu0 0.0
    %2159 = vmatmul.mubr.f32.gmra.mxu0 %v1829
    %v2160 = vpop.f32.mrf.mxu0
    %v2161 = vadd.f32 %v1714, %v2160
    %v2162 = vpop.f32.mrf.mxu0
    %2163 = vmatprep.mubr.f32.mxu0 0.0
    %2164 = vmatmul.mubr.f32.gmra.mxu0 %v1832
    %v2165 = vpop.f32.mrf.mxu0
    %v2166 = vadd.f32 %v1714, %v2165
    %v2167 = vpop.f32.mrf.mxu0
    %2168 = vmatprep.mubr.f32.mxu0 0.0
    %2169 = vmatmul.mubr.f32.gmra.mxu0 %v1835
    %v2170 = vpop.f32.mrf.mxu0
    %v2171 = vadd.f32 %v1714, %v2170
    %v2172 = vpop.f32.mrf.mxu0
    %2173 = vmatprep.mubr.f32.mxu0 0.0
    %2174 = vmatmul.mubr.f32.gmra.mxu0 %v1838
    %v2175 = vpop.f32.mrf.mxu0
    %v2176 = vadd.f32 %v1714, %v2175
    %v2177 = vpop.f32.mrf.mxu0
    %2178 = vmatprep.mubr.f32.mxu0 0.0
    %2179 = vmatmul.mubr.f32.gmra.mxu0 %v1841
    %v2180 = vpop.f32.mrf.mxu0
    %v2181 = vadd.f32 %v1714, %v2180
    %v2182 = vpop.f32.mrf.mxu0
    %2183 = vmatprep.mubr.f32.mxu0 0.0
    %2184 = vmatmul.mubr.f32.gmra.mxu0 %v1844
    %v2185 = vpop.f32.mrf.mxu0
    %v2186 = vadd.f32 %v1714, %v2185
    %v2187 = vpop.f32.mrf.mxu0
    %2188 = vmatprep.mubr.f32.mxu0 0.0
    %2189 = vmatmul.mubr.f32.gmra.mxu0 %v1847
    %v2190 = vpop.f32.mrf.mxu0
    %v2191 = vadd.f32 %v1714, %v2190
    %v2192 = vpop.f32.mrf.mxu0
    %2193 = vmatprep.mubr.f32.mxu0 0.0
    %2194 = vmatmul.mubr.f32.gmra.mxu0 %v1850
    %v2195 = vpop.f32.mrf.mxu0
    %v2196 = vadd.f32 %v1714, %v2195
    %v2197 = vpop.f32.mrf.mxu0
    %2198 = vmatprep.mubr.f32.mxu0 0.0
    %2199 = vmatmul.mubr.f32.gmra.mxu0 %v1853
    %v2200 = vpop.f32.mrf.mxu0
    %v2201 = vadd.f32 %v1714, %v2200
    %v2202 = vpop.f32.mrf.mxu0
    %2203 = vmatprep.mubr.f32.mxu0 0.0
    %2204 = vmatmul.mubr.f32.gmra.mxu0 %v1856
    %v2205 = vpop.f32.mrf.mxu0
    %v2206 = vadd.f32 %v1714, %v2205
    %v2207 = vpop.f32.mrf.mxu0
    %2208 = vmatprep.mubr.f32.mxu0 0.0
    %2209 = vmatmul.mubr.f32.gmra.mxu0 %v1859
    %v2210 = vpop.f32.mrf.mxu0
    %v2211 = vadd.f32 %v1714, %v2210
    %v2212 = vpop.f32.mrf.mxu0
    %2213 = vmatprep.mubr.f32.mxu0 0.0
    %2214 = vmatmul.mubr.f32.gmra.mxu0 %v1862
    %v2215 = vpop.f32.mrf.mxu0
    %v2216 = vadd.f32 %v1714, %v2215
    %v2217 = vpop.f32.mrf.mxu0
    %2218 = vmatprep.mubr.f32.mxu0 0.0
    %2219 = vmatmul.mubr.f32.gmra.mxu0 %v1865
    %v2220 = vpop.f32.mrf.mxu0
    %v2221 = vadd.f32 %v1714, %v2220
    %v2222 = vpop.f32.mrf.mxu0
    %2223 = vmatprep.mubr.f32.mxu0 0.0
    %2224 = vmatmul.mubr.f32.gmra.mxu0 %v1868
    %v2225 = vpop.f32.mrf.mxu0
    %v2226 = vadd.f32 %v1714, %v2225
    %v2227 = vpop.f32.mrf.mxu0
    %2228 = vmatprep.mubr.f32.mxu0 0.0
    %2229 = vmatmul.mubr.f32.gmra.mxu0 %v1871
    %v2230 = vpop.f32.mrf.mxu0
    %v2231 = vadd.f32 %v1714, %v2230
    %v2232 = vpop.f32.mrf.mxu0
    %2233 = vmatprep.mubr.f32.mxu0 0.0
    %2234 = vmatmul.mubr.f32.gmra.mxu0 %v1874
    %v2235 = vpop.f32.mrf.mxu0
    %v2236 = vadd.f32 %v1714, %v2235
    %v2237 = vpop.f32.mrf.mxu0
    %2238 = vmatprep.mubr.f32.mxu0 0.0
    %2239 = vmatmul.mubr.f32.gmra.mxu0 %v1877
    %v2240 = vpop.f32.mrf.mxu0
    %v2241 = vadd.f32 %v1714, %v2240
    %v2242 = vpop.f32.mrf.mxu0
    %2243 = vmatprep.mubr.f32.mxu0 0.0
    %2244 = vmatmul.mubr.f32.gmra.mxu0 %v1880
    %v2245 = vpop.f32.mrf.mxu0
    %v2246 = vadd.f32 %v1714, %v2245
    %v2247 = vpop.f32.mrf.mxu0
    %2248 = vmatprep.mubr.f32.mxu0 0.0
    %2249 = vmatmul.mubr.f32.gmra.mxu0 %v1883
    %v2250 = vpop.f32.mrf.mxu0
    %v2251 = vadd.f32 %v1714, %v2250
    %v2252 = vpop.f32.mrf.mxu0
    %2253 = vmatprep.mubr.f32.mxu0 0.0
    %2254 = vmatmul.mubr.f32.gmra.mxu0 %v1886
    %v2255 = vpop.f32.mrf.mxu0
    %v2256 = vadd.f32 %v1714, %v2255
    %v2257 = vpop.f32.mrf.mxu0
    %2258 = vmatprep.mubr.f32.mxu0 0.0
    %2259 = vmatmul.mubr.f32.gmra.mxu0 %v1889
    %v2260 = vpop.f32.mrf.mxu0
    %v2261 = vadd.f32 %v1714, %v2260
    %v2262 = vpop.f32.mrf.mxu0
    %2263 = vmatprep.mubr.f32.mxu0 0.0
    %2264 = vmatmul.mubr.f32.gmra.mxu0 %v1892
    %v2265 = vpop.f32.mrf.mxu0
    %v2266 = vadd.f32 %v1714, %v2265
    %v2267 = vpop.f32.mrf.mxu0
    %2268 = vmatprep.mubr.f32.mxu0 0.0
    %2269 = vmatmul.mubr.f32.gmra.mxu0 %v1895
    %v2270 = vpop.f32.mrf.mxu0
    %v2271 = vadd.f32 %v1714, %v2270
    %v2272 = vpop.f32.mrf.mxu0
    %2273 = vmatprep.mubr.f32.mxu0 0.0
    %2274 = vmatmul.mubr.f32.gmra.mxu0 %v1898
    %v2275 = vpop.f32.mrf.mxu0
    %v2276 = vadd.f32 %v1714, %v2275
    %v2277 = vpop.f32.mrf.mxu0
    %2278 = vmatprep.mubr.f32.mxu0 0.0
    %2279 = vmatmul.mubr.f32.gmra.mxu0 %v1901
    %v2280 = vpop.f32.mrf.mxu0
    %v2281 = vadd.f32 %v1714, %v2280
    %v2282 = vpop.f32.mrf.mxu0
    %2283 = vmatprep.mubr.f32.mxu0 0.0
    %2284 = vmatmul.mubr.f32.gmra.mxu0 %v1904
    %v2285 = vpop.f32.mrf.mxu0
    %v2286 = vadd.f32 %v1714, %v2285
    %v2287 = vpop.f32.mrf.mxu0
    %2288 = vmatprep.mubr.f32.mxu0 0.0
    %2289 = vmatmul.mubr.f32.gmra.mxu0 %v1907
    %v2290 = vpop.f32.mrf.mxu0
    %v2291 = vadd.f32 %v1714, %v2290
    %v2292 = vpop.f32.mrf.mxu0
    %2293 = vdwg.mxu0
    %v2294 = vmax.f32 %v1976, 0.0
    %v2295 = vmax.f32 %v1981, 0.0
    %v2296 = vmax.f32 %v1986, 0.0
    %v2297 = vmax.f32 %v1991, 0.0
    %v2298 = vmax.f32 %v1996, 0.0
    %v2299 = vmax.f32 %v2001, 0.0
    %v2300 = vmax.f32 %v2006, 0.0
    %v2301 = vmax.f32 %v2011, 0.0
    %v2302 = vmax.f32 %v2016, 0.0
    %v2303 = vmax.f32 %v2021, 0.0
    %v2304 = vmax.f32 %v2026, 0.0
    %v2305 = vmax.f32 %v2031, 0.0
    %v2306 = vmax.f32 %v2036, 0.0
    %v2307 = vmax.f32 %v2041, 0.0
    %v2308 = vmax.f32 %v2046, 0.0
    %v2309 = vmax.f32 %v2051, 0.0
    %v2310 = vmax.f32 %v2056, 0.0
    %v2311 = vmax.f32 %v2061, 0.0
    %v2312 = vmax.f32 %v2066, 0.0
    %v2313 = vmax.f32 %v2071, 0.0
    %v2314 = vmax.f32 %v2076, 0.0
    %v2315 = vmax.f32 %v2081, 0.0
    %v2316 = vmax.f32 %v2086, 0.0
    %v2317 = vmax.f32 %v2091, 0.0
    %v2318 = vmax.f32 %v2096, 0.0
    %v2319 = vmax.f32 %v2101, 0.0
    %v2320 = vmax.f32 %v2106, 0.0
    %v2321 = vmax.f32 %v2111, 0.0
    %v2322 = vmax.f32 %v2116, 0.0
    %v2323 = vmax.f32 %v2121, 0.0
    %v2324 = vmax.f32 %v2126, 0.0
    %v2325 = vmax.f32 %v2131, 0.0
    %v2326 = vmax.f32 %v2136, 0.0
    %v2327 = vmax.f32 %v2141, 0.0
    %v2328 = vmax.f32 %v2146, 0.0
    %v2329 = vmax.f32 %v2151, 0.0
    %v2330 = vmax.f32 %v2156, 0.0
    %v2331 = vmax.f32 %v2161, 0.0
    %v2332 = vmax.f32 %v2166, 0.0
    %v2333 = vmax.f32 %v2171, 0.0
    %v2334 = vmax.f32 %v2176, 0.0
    %v2335 = vmax.f32 %v2181, 0.0
    %v2336 = vmax.f32 %v2186, 0.0
    %v2337 = vmax.f32 %v2191, 0.0
    %v2338 = vmax.f32 %v2196, 0.0
    %v2339 = vmax.f32 %v2201, 0.0
    %v2340 = vmax.f32 %v2206, 0.0
    %v2341 = vmax.f32 %v2211, 0.0
    %v2342 = vmax.f32 %v2216, 0.0
    %v2343 = vmax.f32 %v2221, 0.0
    %v2344 = vmax.f32 %v2226, 0.0
    %v2345 = vmax.f32 %v2231, 0.0
    %v2346 = vmax.f32 %v2236, 0.0
    %v2347 = vmax.f32 %v2241, 0.0
    %v2348 = vmax.f32 %v2246, 0.0
    %v2349 = vmax.f32 %v2251, 0.0
    %v2350 = vmax.f32 %v2256, 0.0
    %v2351 = vmax.f32 %v2261, 0.0
    %v2352 = vmax.f32 %v2266, 0.0
    %v2353 = vmax.f32 %v2271, 0.0
    %v2354 = vmax.f32 %v2276, 0.0
    %v2355 = vmax.f32 %v2281, 0.0
    %v2356 = vmax.f32 %v2286, 0.0
    %v2357 = vmax.f32 %v2291, 0.0
    %v2358 = vld [vmem:[%s10] sm:$0xff]
    %v2359 = vld [vmem:[%s10 + $0x8] sm:$0xff]
    %v2360 = vld [vmem:[%s10 + $0x10] sm:$0xff]
    %v2361 = vld [vmem:[%s10 + $0x18] sm:$0xff]
    %v2362 = vld [vmem:[%s11] sm:$0x1]
    %v2364 = vlaneseq
    %v2365 = vshrl.u32 %v2364, 7
    %v2366 = vsub.s32 0, %v2365
    %v2367 = vrot.slane %v2362, %v2366
    %v2370 = vsel %vm1716, %v2294, 0
    %v2373 = vsel %vm1716, %v2295, 0
    %v2376 = vsel %vm1716, %v2296, 0
    %v2379 = vsel %vm1716, %v2297, 0
    %v2382 = vsel %vm1716, %v2298, 0
    %v2385 = vsel %vm1716, %v2299, 0
    %v2388 = vsel %vm1716, %v2300, 0
    %v2391 = vsel %vm1716, %v2301, 0
    %v2394 = vsel %vm1716, %v2302, 0
    %v2397 = vsel %vm1716, %v2303, 0
    %v2400 = vsel %vm1716, %v2304, 0
    %v2403 = vsel %vm1716, %v2305, 0
    %v2406 = vsel %vm1716, %v2306, 0
    %v2409 = vsel %vm1716, %v2307, 0
    %v2412 = vsel %vm1716, %v2308, 0
    %v2415 = vsel %vm1716, %v2309, 0
    %v2418 = vsel %vm1716, %v2310, 0
    %v2421 = vsel %vm1716, %v2311, 0
    %v2424 = vsel %vm1716, %v2312, 0
    %v2427 = vsel %vm1716, %v2313, 0
    %v2430 = vsel %vm1716, %v2314, 0
    %v2433 = vsel %vm1716, %v2315, 0
    %v2436 = vsel %vm1716, %v2316, 0
    %v2439 = vsel %vm1716, %v2317, 0
    %v2442 = vsel %vm1716, %v2318, 0
    %v2445 = vsel %vm1716, %v2319, 0
    %v2448 = vsel %vm1716, %v2320, 0
    %v2451 = vsel %vm1716, %v2321, 0
    %v2454 = vsel %vm1716, %v2322, 0
    %v2457 = vsel %vm1716, %v2323, 0
    %v2460 = vsel %vm1716, %v2324, 0
    %v2463 = vsel %vm1716, %v2325, 0
    %2465 = vmatprep.subr.mxu0 0.0
    %2466 = vmatpush1.msra.mxu0 0.0
    %2467 = vmatprep.subr.mxu0 0.0
    %2468 = vmatpush1.msra.mxu0 0.0
    %2469 = vmatprep.subr.mxu0 0.0
    %2470 = vmatpush1.msra.mxu0 0.0
    %2471 = vmatprep.subr.mxu0 0.0
    %2472 = vmatpush1.msra.mxu0 0.0
    %2473 = vmatprep.subr.mxu0 0.0
    %2474 = vmatpush1.msra.mxu0 0.0
    %2475 = vmatprep.subr.mxu0 0.0
    %2476 = vmatpush1.msra.mxu0 0.0
    %2477 = vmatprep.subr.mxu0 0.0
    %2478 = vmatpush1.msra.mxu0 0.0
    %2479 = vmatprep.subr.mxu0 0.0
    %2480 = vmatpush1.msra.mxu0 0.0
    %2481 = vmatprep.subr.mxu0 0.0
    %2482 = vmatpush1.msra.mxu0 0.0
    %2483 = vmatprep.subr.mxu0 0.0
    %2484 = vmatpush1.msra.mxu0 0.0
    %2485 = vmatprep.subr.mxu0 0.0
    %2486 = vmatpush1.msra.mxu0 0.0
    %2487 = vmatprep.subr.mxu0 0.0
    %2488 = vmatpush1.msra.mxu0 0.0
    %2489 = vmatprep.subr.mxu0 0.0
    %2490 = vmatpush1.msra.mxu0 %v2361
    %2491 = vmatprep.subr.mxu0 0.0
    %2492 = vmatpush1.msra.mxu0 %v2360
    %2493 = vmatprep.subr.mxu0 0.0
    %2494 = vmatpush1.msra.mxu0 %v2359
    %2495 = vmatprep.subr.mxu0 0.0
    %2496 = vmatpush1.msra.mxu0 %v2358
    %2497 = vmatprep.subr.mxu0 0.0
    %2498 = vmatpush2.msra.mxu0 0.0
    %2499 = vmatprep.subr.mxu0 0.0
    %2500 = vmatpush2.msra.mxu0 0.0
    %2501 = vmatprep.subr.mxu0 0.0
    %2502 = vmatpush2.msra.mxu0 0.0
    %2503 = vmatprep.subr.mxu0 0.0
    %2504 = vmatpush2.msra.mxu0 0.0
    %2505 = vmatprep.subr.mxu0 0.0
    %2506 = vmatpush2.msra.mxu0 0.0
    %2507 = vmatprep.subr.mxu0 0.0
    %2508 = vmatpush2.msra.mxu0 0.0
    %2509 = vmatprep.subr.mxu0 0.0
    %2510 = vmatpush2.msra.mxu0 0.0
    %2511 = vmatprep.subr.mxu0 0.0
    %2512 = vmatpush2.msra.mxu0 0.0
    %2513 = vmatprep.subr.mxu0 0.0
    %2514 = vmatpush2.msra.mxu0 0.0
    %2515 = vmatprep.subr.mxu0 0.0
    %2516 = vmatpush2.msra.mxu0 0.0
    %2517 = vmatprep.subr.mxu0 0.0
    %2518 = vmatpush2.msra.mxu0 0.0
    %2519 = vmatprep.subr.mxu0 0.0
    %2520 = vmatpush2.msra.mxu0 0.0
    %2521 = vmatprep.subr.mxu0 0.0
    %2522 = vmatpush2.msra.mxu0 0.0
    %2523 = vmatprep.subr.mxu0 0.0
    %2524 = vmatpush2.msra.mxu0 0.0
    %2525 = vmatprep.subr.mxu0 0.0
    %2526 = vmatpush2.msra.mxu0 0.0
    %2527 = vmatprep.subr.mxu0 0.0
    %2528 = vmatpush2.msra.mxu0 0.0
    %2529 = vmatprep.mubr.f32.mxu0 0.0
    %2530 = vmatmul.mubr.f32.gmra.mxu0 %v2370
    %v2531 = vpop.f32.mrf.mxu0
    %v2532 = vadd.f32 %v2367, %v2531
    %v2533 = vpop.f32.mrf.mxu0
    %2534 = vmatprep.mubr.f32.mxu0 0.0
    %2535 = vmatmul.mubr.f32.gmra.mxu0 %v2373
    %v2536 = vpop.f32.mrf.mxu0
    %v2537 = vadd.f32 %v2367, %v2536
    %v2538 = vpop.f32.mrf.mxu0
    %2539 = vmatprep.mubr.f32.mxu0 0.0
    %2540 = vmatmul.mubr.f32.gmra.mxu0 %v2376
    %v2541 = vpop.f32.mrf.mxu0
    %v2542 = vadd.f32 %v2367, %v2541
    %v2543 = vpop.f32.mrf.mxu0
    %2544 = vmatprep.mubr.f32.mxu0 0.0
    %2545 = vmatmul.mubr.f32.gmra.mxu0 %v2379
    %v2546 = vpop.f32.mrf.mxu0
    %v2547 = vadd.f32 %v2367, %v2546
    %v2548 = vpop.f32.mrf.mxu0
    %2549 = vmatprep.mubr.f32.mxu0 0.0
    %2550 = vmatmul.mubr.f32.gmra.mxu0 %v2382
    %v2551 = vpop.f32.mrf.mxu0
    %v2552 = vadd.f32 %v2367, %v2551
    %v2553 = vpop.f32.mrf.mxu0
    %2554 = vmatprep.mubr.f32.mxu0 0.0
    %2555 = vmatmul.mubr.f32.gmra.mxu0 %v2385
    %v2556 = vpop.f32.mrf.mxu0
    %v2557 = vadd.f32 %v2367, %v2556
    %v2558 = vpop.f32.mrf.mxu0
    %2559 = vmatprep.mubr.f32.mxu0 0.0
    %2560 = vmatmul.mubr.f32.gmra.mxu0 %v2388
    %v2561 = vpop.f32.mrf.mxu0
    %v2562 = vadd.f32 %v2367, %v2561
    %v2563 = vpop.f32.mrf.mxu0
    %2564 = vmatprep.mubr.f32.mxu0 0.0
    %2565 = vmatmul.mubr.f32.gmra.mxu0 %v2391
    %v2566 = vpop.f32.mrf.mxu0
    %v2567 = vadd.f32 %v2367, %v2566
    %v2568 = vpop.f32.mrf.mxu0
    %2569 = vmatprep.mubr.f32.mxu0 0.0
    %2570 = vmatmul.mubr.f32.gmra.mxu0 %v2394
    %v2571 = vpop.f32.mrf.mxu0
    %v2572 = vadd.f32 %v2367, %v2571
    %v2573 = vpop.f32.mrf.mxu0
    %2574 = vmatprep.mubr.f32.mxu0 0.0
    %2575 = vmatmul.mubr.f32.gmra.mxu0 %v2397
    %v2576 = vpop.f32.mrf.mxu0
    %v2577 = vadd.f32 %v2367, %v2576
    %v2578 = vpop.f32.mrf.mxu0
    %2579 = vmatprep.mubr.f32.mxu0 0.0
    %2580 = vmatmul.mubr.f32.gmra.mxu0 %v2400
    %v2581 = vpop.f32.mrf.mxu0
    %v2582 = vadd.f32 %v2367, %v2581
    %v2583 = vpop.f32.mrf.mxu0
    %2584 = vmatprep.mubr.f32.mxu0 0.0
    %2585 = vmatmul.mubr.f32.gmra.mxu0 %v2403
    %v2586 = vpop.f32.mrf.mxu0
    %v2587 = vadd.f32 %v2367, %v2586
    %v2588 = vpop.f32.mrf.mxu0
    %2589 = vmatprep.mubr.f32.mxu0 0.0
    %2590 = vmatmul.mubr.f32.gmra.mxu0 %v2406
    %v2591 = vpop.f32.mrf.mxu0
    %v2592 = vadd.f32 %v2367, %v2591
    %v2593 = vpop.f32.mrf.mxu0
    %2594 = vmatprep.mubr.f32.mxu0 0.0
    %2595 = vmatmul.mubr.f32.gmra.mxu0 %v2409
    %v2596 = vpop.f32.mrf.mxu0
    %v2597 = vadd.f32 %v2367, %v2596
    %v2598 = vpop.f32.mrf.mxu0
    %2599 = vmatprep.mubr.f32.mxu0 0.0
    %2600 = vmatmul.mubr.f32.gmra.mxu0 %v2412
    %v2601 = vpop.f32.mrf.mxu0
    %v2602 = vadd.f32 %v2367, %v2601
    %v2603 = vpop.f32.mrf.mxu0
    %2604 = vmatprep.mubr.f32.mxu0 0.0
    %2605 = vmatmul.mubr.f32.gmra.mxu0 %v2415
    %v2606 = vpop.f32.mrf.mxu0
    %v2607 = vadd.f32 %v2367, %v2606
    %v2608 = vpop.f32.mrf.mxu0
    %2609 = vmatprep.mubr.f32.mxu0 0.0
    %2610 = vmatmul.mubr.f32.gmra.mxu0 %v2418
    %v2611 = vpop.f32.mrf.mxu0
    %v2612 = vadd.f32 %v2367, %v2611
    %v2613 = vpop.f32.mrf.mxu0
    %2614 = vmatprep.mubr.f32.mxu0 0.0
    %2615 = vmatmul.mubr.f32.gmra.mxu0 %v2421
    %v2616 = vpop.f32.mrf.mxu0
    %v2617 = vadd.f32 %v2367, %v2616
    %v2618 = vpop.f32.mrf.mxu0
    %2619 = vmatprep.mubr.f32.mxu0 0.0
    %2620 = vmatmul.mubr.f32.gmra.mxu0 %v2424
    %v2621 = vpop.f32.mrf.mxu0
    %v2622 = vadd.f32 %v2367, %v2621
    %v2623 = vpop.f32.mrf.mxu0
    %2624 = vmatprep.mubr.f32.mxu0 0.0
    %2625 = vmatmul.mubr.f32.gmra.mxu0 %v2427
    %v2626 = vpop.f32.mrf.mxu0
    %v2627 = vadd.f32 %v2367, %v2626
    %v2628 = vpop.f32.mrf.mxu0
    %2629 = vmatprep.mubr.f32.mxu0 0.0
    %2630 = vmatmul.mubr.f32.gmra.mxu0 %v2430
    %v2631 = vpop.f32.mrf.mxu0
    %v2632 = vadd.f32 %v2367, %v2631
    %v2633 = vpop.f32.mrf.mxu0
    %2634 = vmatprep.mubr.f32.mxu0 0.0
    %2635 = vmatmul.mubr.f32.gmra.mxu0 %v2433
    %v2636 = vpop.f32.mrf.mxu0
    %v2637 = vadd.f32 %v2367, %v2636
    %v2638 = vpop.f32.mrf.mxu0
    %2639 = vmatprep.mubr.f32.mxu0 0.0
    %2640 = vmatmul.mubr.f32.gmra.mxu0 %v2436
    %v2641 = vpop.f32.mrf.mxu0
    %v2642 = vadd.f32 %v2367, %v2641
    %v2643 = vpop.f32.mrf.mxu0
    %2644 = vmatprep.mubr.f32.mxu0 0.0
    %2645 = vmatmul.mubr.f32.gmra.mxu0 %v2439
    %v2646 = vpop.f32.mrf.mxu0
    %v2647 = vadd.f32 %v2367, %v2646
    %v2648 = vpop.f32.mrf.mxu0
    %2649 = vmatprep.mubr.f32.mxu0 0.0
    %2650 = vmatmul.mubr.f32.gmra.mxu0 %v2442
    %v2651 = vpop.f32.mrf.mxu0
    %v2652 = vadd.f32 %v2367, %v2651
    %v2653 = vpop.f32.mrf.mxu0
    %2654 = vmatprep.mubr.f32.mxu0 0.0
    %2655 = vmatmul.mubr.f32.gmra.mxu0 %v2445
    %v2656 = vpop.f32.mrf.mxu0
    %v2657 = vadd.f32 %v2367, %v2656
    %v2658 = vpop.f32.mrf.mxu0
    %2659 = vmatprep.mubr.f32.mxu0 0.0
    %2660 = vmatmul.mubr.f32.gmra.mxu0 %v2448
    %v2661 = vpop.f32.mrf.mxu0
    %v2662 = vadd.f32 %v2367, %v2661
    %v2663 = vpop.f32.mrf.mxu0
    %2664 = vmatprep.mubr.f32.mxu0 0.0
    %2665 = vmatmul.mubr.f32.gmra.mxu0 %v2451
    %v2666 = vpop.f32.mrf.mxu0
    %v2667 = vadd.f32 %v2367, %v2666
    %v2668 = vpop.f32.mrf.mxu0
    %2669 = vmatprep.mubr.f32.mxu0 0.0
    %2670 = vmatmul.mubr.f32.gmra.mxu0 %v2454
    %v2671 = vpop.f32.mrf.mxu0
    %v2672 = vadd.f32 %v2367, %v2671
    %v2673 = vpop.f32.mrf.mxu0
    %2674 = vmatprep.mubr.f32.mxu0 0.0
    %2675 = vmatmul.mubr.f32.gmra.mxu0 %v2457
    %v2676 = vpop.f32.mrf.mxu0
    %v2677 = vadd.f32 %v2367, %v2676
    %v2678 = vpop.f32.mrf.mxu0
    %2679 = vmatprep.mubr.f32.mxu0 0.0
    %2680 = vmatmul.mubr.f32.gmra.mxu0 %v2460
    %v2681 = vpop.f32.mrf.mxu0
    %v2682 = vadd.f32 %v2367, %v2681
    %v2683 = vpop.f32.mrf.mxu0
    %2684 = vmatprep.mubr.f32.mxu0 0.0
    %2685 = vmatmul.mubr.f32.gmra.mxu0 %v2463
    %v2686 = vpop.f32.mrf.mxu0
    %v2687 = vadd.f32 %v2367, %v2686
    %v2688 = vpop.f32.mrf.mxu0
    %2689 = vdwg.mxu0
    %v2690 = vld [vmem:[%s12] sm:$0xff]
    %v2691 = vld [vmem:[%s12 + $0x8] sm:$0xff]
    %v2692 = vld [vmem:[%s12 + $0x10] sm:$0xff]
    %v2693 = vld [vmem:[%s12 + $0x18] sm:$0xff]
    %v2694 = vld [vmem:[%s13] sm:$0x1]
    %v2696 = vlaneseq
    %v2697 = vshrl.u32 %v2696, 7
    %v2698 = vsub.s32 0, %v2697
    %v2699 = vrot.slane %v2694, %v2698
    %v2702 = vsel %vm1716, %v2326, 0
    %v2705 = vsel %vm1716, %v2327, 0
    %v2708 = vsel %vm1716, %v2328, 0
    %v2711 = vsel %vm1716, %v2329, 0
    %v2714 = vsel %vm1716, %v2330, 0
    %v2717 = vsel %vm1716, %v2331, 0
    %v2720 = vsel %vm1716, %v2332, 0
    %v2723 = vsel %vm1716, %v2333, 0
    %v2726 = vsel %vm1716, %v2334, 0
    %v2729 = vsel %vm1716, %v2335, 0
    %v2732 = vsel %vm1716, %v2336, 0
    %v2735 = vsel %vm1716, %v2337, 0
    %v2738 = vsel %vm1716, %v2338, 0
    %v2741 = vsel %vm1716, %v2339, 0
    %v2744 = vsel %vm1716, %v2340, 0
    %v2747 = vsel %vm1716, %v2341, 0
    %v2750 = vsel %vm1716, %v2342, 0
    %v2753 = vsel %vm1716, %v2343, 0
    %v2756 = vsel %vm1716, %v2344, 0
    %v2759 = vsel %vm1716, %v2345, 0
    %v2762 = vsel %vm1716, %v2346, 0
    %v2765 = vsel %vm1716, %v2347, 0
    %v2768 = vsel %vm1716, %v2348, 0
    %v2771 = vsel %vm1716, %v2349, 0
    %v2774 = vsel %vm1716, %v2350, 0
    %v2777 = vsel %vm1716, %v2351, 0
    %v2780 = vsel %vm1716, %v2352, 0
    %v2783 = vsel %vm1716, %v2353, 0
    %v2786 = vsel %vm1716, %v2354, 0
    %v2789 = vsel %vm1716, %v2355, 0
    %v2792 = vsel %vm1716, %v2356, 0
    %v2795 = vsel %vm1716, %v2357, 0
    %2797 = vmatprep.subr.mxu0 0.0
    %2798 = vmatpush1.msra.mxu0 0.0
    %2799 = vmatprep.subr.mxu0 0.0
    %2800 = vmatpush1.msra.mxu0 0.0
    %2801 = vmatprep.subr.mxu0 0.0
    %2802 = vmatpush1.msra.mxu0 0.0
    %2803 = vmatprep.subr.mxu0 0.0
    %2804 = vmatpush1.msra.mxu0 0.0
    %2805 = vmatprep.subr.mxu0 0.0
    %2806 = vmatpush1.msra.mxu0 0.0
    %2807 = vmatprep.subr.mxu0 0.0
    %2808 = vmatpush1.msra.mxu0 0.0
    %2809 = vmatprep.subr.mxu0 0.0
    %2810 = vmatpush1.msra.mxu0 0.0
    %2811 = vmatprep.subr.mxu0 0.0
    %2812 = vmatpush1.msra.mxu0 0.0
    %2813 = vmatprep.subr.mxu0 0.0
    %2814 = vmatpush1.msra.mxu0 0.0
    %2815 = vmatprep.subr.mxu0 0.0
    %2816 = vmatpush1.msra.mxu0 0.0
    %2817 = vmatprep.subr.mxu0 0.0
    %2818 = vmatpush1.msra.mxu0 0.0
    %2819 = vmatprep.subr.mxu0 0.0
    %2820 = vmatpush1.msra.mxu0 0.0
    %2821 = vmatprep.subr.mxu0 0.0
    %2822 = vmatpush1.msra.mxu0 %v2693
    %2823 = vmatprep.subr.mxu0 0.0
    %2824 = vmatpush1.msra.mxu0 %v2692
    %2825 = vmatprep.subr.mxu0 0.0
    %2826 = vmatpush1.msra.mxu0 %v2691
    %2827 = vmatprep.subr.mxu0 0.0
    %2828 = vmatpush1.msra.mxu0 %v2690
    %2829 = vmatprep.subr.mxu0 0.0
    %2830 = vmatpush2.msra.mxu0 0.0
    %2831 = vmatprep.subr.mxu0 0.0
    %2832 = vmatpush2.msra.mxu0 0.0
    %2833 = vmatprep.subr.mxu0 0.0
    %2834 = vmatpush2.msra.mxu0 0.0
    %2835 = vmatprep.subr.mxu0 0.0
    %2836 = vmatpush2.msra.mxu0 0.0
    %2837 = vmatprep.subr.mxu0 0.0
    %2838 = vmatpush2.msra.mxu0 0.0
    %2839 = vmatprep.subr.mxu0 0.0
    %2840 = vmatpush2.msra.mxu0 0.0
    %2841 = vmatprep.subr.mxu0 0.0
    %2842 = vmatpush2.msra.mxu0 0.0
    %2843 = vmatprep.subr.mxu0 0.0
    %2844 = vmatpush2.msra.mxu0 0.0
    %2845 = vmatprep.subr.mxu0 0.0
    %2846 = vmatpush2.msra.mxu0 0.0
    %2847 = vmatprep.subr.mxu0 0.0
    %2848 = vmatpush2.msra.mxu0 0.0
    %2849 = vmatprep.subr.mxu0 0.0
    %2850 = vmatpush2.msra.mxu0 0.0
    %2851 = vmatprep.subr.mxu0 0.0
    %2852 = vmatpush2.msra.mxu0 0.0
    %2853 = vmatprep.subr.mxu0 0.0
    %2854 = vmatpush2.msra.mxu0 0.0
    %2855 = vmatprep.subr.mxu0 0.0
    %2856 = vmatpush2.msra.mxu0 0.0
    %2857 = vmatprep.subr.mxu0 0.0
    %2858 = vmatpush2.msra.mxu0 0.0
    %2859 = vmatprep.subr.mxu0 0.0
    %2860 = vmatpush2.msra.mxu0 0.0
    %2861 = vmatprep.mubr.f32.mxu0 0.0
    %2862 = vmatmul.mubr.f32.gmra.mxu0 %v2702
    %v2863 = vpop.f32.mrf.mxu0
    %v2864 = vadd.f32 %v2699, %v2863
    %v2865 = vpop.f32.mrf.mxu0
    %2866 = vmatprep.mubr.f32.mxu0 0.0
    %2867 = vmatmul.mubr.f32.gmra.mxu0 %v2705
    %v2868 = vpop.f32.mrf.mxu0
    %v2869 = vadd.f32 %v2699, %v2868
    %v2870 = vpop.f32.mrf.mxu0
    %2871 = vmatprep.mubr.f32.mxu0 0.0
    %2872 = vmatmul.mubr.f32.gmra.mxu0 %v2708
    %v2873 = vpop.f32.mrf.mxu0
    %v2874 = vadd.f32 %v2699, %v2873
    %v2875 = vpop.f32.mrf.mxu0
    %2876 = vmatprep.mubr.f32.mxu0 0.0
    %2877 = vmatmul.mubr.f32.gmra.mxu0 %v2711
    %v2878 = vpop.f32.mrf.mxu0
    %v2879 = vadd.f32 %v2699, %v2878
    %v2880 = vpop.f32.mrf.mxu0
    %2881 = vmatprep.mubr.f32.mxu0 0.0
    %2882 = vmatmul.mubr.f32.gmra.mxu0 %v2714
    %v2883 = vpop.f32.mrf.mxu0
    %v2884 = vadd.f32 %v2699, %v2883
    %v2885 = vpop.f32.mrf.mxu0
    %2886 = vmatprep.mubr.f32.mxu0 0.0
    %2887 = vmatmul.mubr.f32.gmra.mxu0 %v2717
    %v2888 = vpop.f32.mrf.mxu0
    %v2889 = vadd.f32 %v2699, %v2888
    %v2890 = vpop.f32.mrf.mxu0
    %2891 = vmatprep.mubr.f32.mxu0 0.0
    %2892 = vmatmul.mubr.f32.gmra.mxu0 %v2720
    %v2893 = vpop.f32.mrf.mxu0
    %v2894 = vadd.f32 %v2699, %v2893
    %v2895 = vpop.f32.mrf.mxu0
    %2896 = vmatprep.mubr.f32.mxu0 0.0
    %2897 = vmatmul.mubr.f32.gmra.mxu0 %v2723
    %v2898 = vpop.f32.mrf.mxu0
    %v2899 = vadd.f32 %v2699, %v2898
    %v2900 = vpop.f32.mrf.mxu0
    %2901 = vmatprep.mubr.f32.mxu0 0.0
    %2902 = vmatmul.mubr.f32.gmra.mxu0 %v2726
    %v2903 = vpop.f32.mrf.mxu0
    %v2904 = vadd.f32 %v2699, %v2903
    %v2905 = vpop.f32.mrf.mxu0
    %2906 = vmatprep.mubr.f32.mxu0 0.0
    %2907 = vmatmul.mubr.f32.gmra.mxu0 %v2729
    %v2908 = vpop.f32.mrf.mxu0
    %v2909 = vadd.f32 %v2699, %v2908
    %v2910 = vpop.f32.mrf.mxu0
    %2911 = vmatprep.mubr.f32.mxu0 0.0
    %2912 = vmatmul.mubr.f32.gmra.mxu0 %v2732
    %v2913 = vpop.f32.mrf.mxu0
    %v2914 = vadd.f32 %v2699, %v2913
    %v2915 = vpop.f32.mrf.mxu0
    %2916 = vmatprep.mubr.f32.mxu0 0.0
    %2917 = vmatmul.mubr.f32.gmra.mxu0 %v2735
    %v2918 = vpop.f32.mrf.mxu0
    %v2919 = vadd.f32 %v2699, %v2918
    %v2920 = vpop.f32.mrf.mxu0
    %2921 = vmatprep.mubr.f32.mxu0 0.0
    %2922 = vmatmul.mubr.f32.gmra.mxu0 %v2738
    %v2923 = vpop.f32.mrf.mxu0
    %v2924 = vadd.f32 %v2699, %v2923
    %v2925 = vpop.f32.mrf.mxu0
    %2926 = vmatprep.mubr.f32.mxu0 0.0
    %2927 = vmatmul.mubr.f32.gmra.mxu0 %v2741
    %v2928 = vpop.f32.mrf.mxu0
    %v2929 = vadd.f32 %v2699, %v2928
    %v2930 = vpop.f32.mrf.mxu0
    %2931 = vmatprep.mubr.f32.mxu0 0.0
    %2932 = vmatmul.mubr.f32.gmra.mxu0 %v2744
    %v2933 = vpop.f32.mrf.mxu0
    %v2934 = vadd.f32 %v2699, %v2933
    %v2935 = vpop.f32.mrf.mxu0
    %2936 = vmatprep.mubr.f32.mxu0 0.0
    %2937 = vmatmul.mubr.f32.gmra.mxu0 %v2747
    %v2938 = vpop.f32.mrf.mxu0
    %v2939 = vadd.f32 %v2699, %v2938
    %v2940 = vpop.f32.mrf.mxu0
    %2941 = vmatprep.mubr.f32.mxu0 0.0
    %2942 = vmatmul.mubr.f32.gmra.mxu0 %v2750
    %v2943 = vpop.f32.mrf.mxu0
    %v2944 = vadd.f32 %v2699, %v2943
    %v2945 = vpop.f32.mrf.mxu0
    %2946 = vmatprep.mubr.f32.mxu0 0.0
    %2947 = vmatmul.mubr.f32.gmra.mxu0 %v2753
    %v2948 = vpop.f32.mrf.mxu0
    %v2949 = vadd.f32 %v2699, %v2948
    %v2950 = vpop.f32.mrf.mxu0
    %2951 = vmatprep.mubr.f32.mxu0 0.0
    %2952 = vmatmul.mubr.f32.gmra.mxu0 %v2756
    %v2953 = vpop.f32.mrf.mxu0
    %v2954 = vadd.f32 %v2699, %v2953
    %v2955 = vpop.f32.mrf.mxu0
    %2956 = vmatprep.mubr.f32.mxu0 0.0
    %2957 = vmatmul.mubr.f32.gmra.mxu0 %v2759
    %v2958 = vpop.f32.mrf.mxu0
    %v2959 = vadd.f32 %v2699, %v2958
    %v2960 = vpop.f32.mrf.mxu0
    %2961 = vmatprep.mubr.f32.mxu0 0.0
    %2962 = vmatmul.mubr.f32.gmra.mxu0 %v2762
    %v2963 = vpop.f32.mrf.mxu0
    %v2964 = vadd.f32 %v2699, %v2963
    %v2965 = vpop.f32.mrf.mxu0
    %2966 = vmatprep.mubr.f32.mxu0 0.0
    %2967 = vmatmul.mubr.f32.gmra.mxu0 %v2765
    %v2968 = vpop.f32.mrf.mxu0
    %v2969 = vadd.f32 %v2699, %v2968
    %v2970 = vpop.f32.mrf.mxu0
    %2971 = vmatprep.mubr.f32.mxu0 0.0
    %2972 = vmatmul.mubr.f32.gmra.mxu0 %v2768
    %v2973 = vpop.f32.mrf.mxu0
    %v2974 = vadd.f32 %v2699, %v2973
    %v2975 = vpop.f32.mrf.mxu0
    %2976 = vmatprep.mubr.f32.mxu0 0.0
    %2977 = vmatmul.mubr.f32.gmra.mxu0 %v2771
    %v2978 = vpop.f32.mrf.mxu0
    %v2979 = vadd.f32 %v2699, %v2978
    %v2980 = vpop.f32.mrf.mxu0
    %2981 = vmatprep.mubr.f32.mxu0 0.0
    %2982 = vmatmul.mubr.f32.gmra.mxu0 %v2774
    %v2983 = vpop.f32.mrf.mxu0
    %v2984 = vadd.f32 %v2699, %v2983
    %v2985 = vpop.f32.mrf.mxu0
    %2986 = vmatprep.mubr.f32.mxu0 0.0
    %2987 = vmatmul.mubr.f32.gmra.mxu0 %v2777
    %v2988 = vpop.f32.mrf.mxu0
    %v2989 = vadd.f32 %v2699, %v2988
    %v2990 = vpop.f32.mrf.mxu0
    %2991 = vmatprep.mubr.f32.mxu0 0.0
    %2992 = vmatmul.mubr.f32.gmra.mxu0 %v2780
    %v2993 = vpop.f32.mrf.mxu0
    %v2994 = vadd.f32 %v2699, %v2993
    %v2995 = vpop.f32.mrf.mxu0
    %2996 = vmatprep.mubr.f32.mxu0 0.0
    %2997 = vmatmul.mubr.f32.gmra.mxu0 %v2783
    %v2998 = vpop.f32.mrf.mxu0
    %v2999 = vadd.f32 %v2699, %v2998
    %v3000 = vpop.f32.mrf.mxu0
    %3001 = vmatprep.mubr.f32.mxu0 0.0
    %3002 = vmatmul.mubr.f32.gmra.mxu0 %v2786
    %v3003 = vpop.f32.mrf.mxu0
    %v3004 = vadd.f32 %v2699, %v3003
    %v3005 = vpop.f32.mrf.mxu0
    %3006 = vmatprep.mubr.f32.mxu0 0.0
    %3007 = vmatmul.mubr.f32.gmra.mxu0 %v2789
    %v3008 = vpop.f32.mrf.mxu0
    %v3009 = vadd.f32 %v2699, %v3008
    %v3010 = vpop.f32.mrf.mxu0
    %3011 = vmatprep.mubr.f32.mxu0 0.0
    %3012 = vmatmul.mubr.f32.gmra.mxu0 %v2792
    %v3013 = vpop.f32.mrf.mxu0
    %v3014 = vadd.f32 %v2699, %v3013
    %v3015 = vpop.f32.mrf.mxu0
    %3016 = vmatprep.mubr.f32.mxu0 0.0
    %3017 = vmatmul.mubr.f32.gmra.mxu0 %v2795
    %v3018 = vpop.f32.mrf.mxu0
    %v3019 = vadd.f32 %v2699, %v3018
    %v3020 = vpop.f32.mrf.mxu0
    %3021 = vdwg.mxu0
    %3054 = vrot.lane.b32.xlu0 %v2864, 5
    %v3055 = vpop.permute.xlu0 %3054
    %3056 = vrot.lane.b32.xlu0 %v2869, 5
    %v3057 = vpop.permute.xlu0 %3056
    %3058 = vrot.lane.b32.xlu0 %v2874, 5
    %v3059 = vpop.permute.xlu0 %3058
    %3060 = vrot.lane.b32.xlu0 %v2879, 5
    %v3061 = vpop.permute.xlu0 %3060
    %3062 = vrot.lane.b32.xlu0 %v2884, 5
    %v3063 = vpop.permute.xlu0 %3062
    %3064 = vrot.lane.b32.xlu0 %v2889, 5
    %v3065 = vpop.permute.xlu0 %3064
    %3066 = vrot.lane.b32.xlu0 %v2894, 5
    %v3067 = vpop.permute.xlu0 %3066
    %3068 = vrot.lane.b32.xlu0 %v2899, 5
    %v3069 = vpop.permute.xlu0 %3068
    %3070 = vrot.lane.b32.xlu0 %v2904, 5
    %v3071 = vpop.permute.xlu0 %3070
    %3072 = vrot.lane.b32.xlu0 %v2909, 5
    %v3073 = vpop.permute.xlu0 %3072
    %3074 = vrot.lane.b32.xlu0 %v2914, 5
    %v3075 = vpop.permute.xlu0 %3074
    %3076 = vrot.lane.b32.xlu0 %v2919, 5
    %v3077 = vpop.permute.xlu0 %3076
    %3078 = vrot.lane.b32.xlu0 %v2924, 5
    %v3079 = vpop.permute.xlu0 %3078
    %3080 = vrot.lane.b32.xlu0 %v2929, 5
    %v3081 = vpop.permute.xlu0 %3080
    %3082 = vrot.lane.b32.xlu0 %v2934, 5
    %v3083 = vpop.permute.xlu0 %3082
    %3084 = vrot.lane.b32.xlu0 %v2939, 5
    %v3085 = vpop.permute.xlu0 %3084
    %3086 = vrot.lane.b32.xlu0 %v2944, 5
    %v3087 = vpop.permute.xlu0 %3086
    %3088 = vrot.lane.b32.xlu0 %v2949, 5
    %v3089 = vpop.permute.xlu0 %3088
    %3090 = vrot.lane.b32.xlu0 %v2954, 5
    %v3091 = vpop.permute.xlu0 %3090
    %3092 = vrot.lane.b32.xlu0 %v2959, 5
    %v3093 = vpop.permute.xlu0 %3092
    %3094 = vrot.lane.b32.xlu0 %v2964, 5
    %v3095 = vpop.permute.xlu0 %3094
    %3096 = vrot.lane.b32.xlu0 %v2969, 5
    %v3097 = vpop.permute.xlu0 %3096
    %3098 = vrot.lane.b32.xlu0 %v2974, 5
    %v3099 = vpop.permute.xlu0 %3098
    %3100 = vrot.lane.b32.xlu0 %v2979, 5
    %v3101 = vpop.permute.xlu0 %3100
    %3102 = vrot.lane.b32.xlu0 %v2984, 5
    %v3103 = vpop.permute.xlu0 %3102
    %3104 = vrot.lane.b32.xlu0 %v2989, 5
    %v3105 = vpop.permute.xlu0 %3104
    %3106 = vrot.lane.b32.xlu0 %v2994, 5
    %v3107 = vpop.permute.xlu0 %3106
    %3108 = vrot.lane.b32.xlu0 %v2999, 5
    %v3109 = vpop.permute.xlu0 %3108
    %3110 = vrot.lane.b32.xlu0 %v3004, 5
    %v3111 = vpop.permute.xlu0 %3110
    %3112 = vrot.lane.b32.xlu0 %v3009, 5
    %v3113 = vpop.permute.xlu0 %3112
    %3114 = vrot.lane.b32.xlu0 %v3014, 5
    %v3115 = vpop.permute.xlu0 %3114
    %3116 = vrot.lane.b32.xlu0 %v3019, 5
    %v3117 = vpop.permute.xlu0 %3116
    %vm3150 = vcmask 39936
    %v3151 = vsel %vm3150, %v2532, %v3055
    %v3152 = vsel %vm3150, %v2537, %v3057
    %v3153 = vsel %vm3150, %v2542, %v3059
    %v3154 = vsel %vm3150, %v2547, %v3061
    %v3155 = vsel %vm3150, %v2552, %v3063
    %v3156 = vsel %vm3150, %v2557, %v3065
    %v3157 = vsel %vm3150, %v2562, %v3067
    %v3158 = vsel %vm3150, %v2567, %v3069
    %v3159 = vsel %vm3150, %v2572, %v3071
    %v3160 = vsel %vm3150, %v2577, %v3073
    %v3161 = vsel %vm3150, %v2582, %v3075
    %v3162 = vsel %vm3150, %v2587, %v3077
    %v3163 = vsel %vm3150, %v2592, %v3079
    %v3164 = vsel %vm3150, %v2597, %v3081
    %v3165 = vsel %vm3150, %v2602, %v3083
    %v3166 = vsel %vm3150, %v2607, %v3085
    %v3167 = vsel %vm3150, %v2612, %v3087
    %v3168 = vsel %vm3150, %v2617, %v3089
    %v3169 = vsel %vm3150, %v2622, %v3091
    %v3170 = vsel %vm3150, %v2627, %v3093
    %v3171 = vsel %vm3150, %v2632, %v3095
    %v3172 = vsel %vm3150, %v2637, %v3097
    %v3173 = vsel %vm3150, %v2642, %v3099
    %v3174 = vsel %vm3150, %v2647, %v3101
    %v3175 = vsel %vm3150, %v2652, %v3103
    %v3176 = vsel %vm3150, %v2657, %v3105
    %v3177 = vsel %vm3150, %v2662, %v3107
    %v3178 = vsel %vm3150, %v2667, %v3109
    %v3179 = vsel %vm3150, %v2672, %v3111
    %v3180 = vsel %vm3150, %v2677, %v3113
    %v3181 = vsel %vm3150, %v2682, %v3115
    %v3182 = vsel %vm3150, %v2687, %v3117
    %3183 = vxpose.xlu0.b32.start [1/16] %v3151, 128
    %3184 = vxpose.xlu0.b32.cont [2/16] %v3152, 128
    %3185 = vxpose.xlu0.b32.cont [3/16] %v3153, 128
    %3186 = vxpose.xlu0.b32.cont [4/16] %v3154, 128
    %3187 = vxpose.xlu0.b32.cont [5/16] %v3155, 128
    %3188 = vxpose.xlu0.b32.cont [6/16] %v3156, 128
    %3189 = vxpose.xlu0.b32.cont [7/16] %v3157, 128
    %3190 = vxpose.xlu0.b32.cont [8/16] %v3158, 128
    %3191 = vxpose.xlu0.b32.cont [9/16] %v3159, 128
    %3192 = vxpose.xlu0.b32.cont [10/16] %v3160, 128
    %3193 = vxpose.xlu0.b32.cont [11/16] %v3161, 128
    %3194 = vxpose.xlu0.b32.cont [12/16] %v3162, 128
    %3195 = vxpose.xlu0.b32.cont [13/16] %v3163, 128
    %3196 = vxpose.xlu0.b32.cont [14/16] %v3164, 128
    %3197 = vxpose.xlu0.b32.cont [15/16] %v3165, 128
    %3198 = vxpose.xlu0.b32.end [16/16] %v3166, 128
    %v3199 = vpop.trf.xlu0
    %v3200 = vpop.trf.xlu0
    %v3201 = vpop.trf.xlu0
    %v3202 = vpop.trf.xlu0
    %v3203 = vpop.trf.xlu0
    %v3204 = vpop.trf.xlu0
    %v3205 = vpop.trf.xlu0
    %v3206 = vpop.trf.xlu0
    %v3207 = vpop.trf.xlu0
    %v3208 = vpop.trf.xlu0
    %v3209 = vpop.trf.xlu0
    %v3210 = vpop.trf.xlu0
    %v3211 = vpop.trf.xlu0
    %v3212 = vpop.trf.xlu0
    %v3213 = vpop.trf.xlu0
    %v3214 = vpop.trf.xlu0
    %3215 = vxpose.xlu0.b32.start [1/16] %v3167, 128
    %3216 = vxpose.xlu0.b32.cont [2/16] %v3168, 128
    %3217 = vxpose.xlu0.b32.cont [3/16] %v3169, 128
    %3218 = vxpose.xlu0.b32.cont [4/16] %v3170, 128
    %3219 = vxpose.xlu0.b32.cont [5/16] %v3171, 128
    %3220 = vxpose.xlu0.b32.cont [6/16] %v3172, 128
    %3221 = vxpose.xlu0.b32.cont [7/16] %v3173, 128
    %3222 = vxpose.xlu0.b32.cont [8/16] %v3174, 128
    %3223 = vxpose.xlu0.b32.cont [9/16] %v3175, 128
    %3224 = vxpose.xlu0.b32.cont [10/16] %v3176, 128
    %3225 = vxpose.xlu0.b32.cont [11/16] %v3177, 128
    %3226 = vxpose.xlu0.b32.cont [12/16] %v3178, 128
    %3227 = vxpose.xlu0.b32.cont [13/16] %v3179, 128
    %3228 = vxpose.xlu0.b32.cont [14/16] %v3180, 128
    %3229 = vxpose.xlu0.b32.cont [15/16] %v3181, 128
    %3230 = vxpose.xlu0.b32.end [16/16] %v3182, 128
    %v3231 = vpop.trf.xlu0
    %v3232 = vpop.trf.xlu0
    %v3233 = vpop.trf.xlu0
    %v3234 = vpop.trf.xlu0
    %v3235 = vpop.trf.xlu0
    %v3236 = vpop.trf.xlu0
    %v3237 = vpop.trf.xlu0
    %v3238 = vpop.trf.xlu0
    %v3239 = vpop.trf.xlu0
    %v3240 = vpop.trf.xlu0
    %v3241 = vpop.trf.xlu0
    %v3242 = vpop.trf.xlu0
    %v3243 = vpop.trf.xlu0
    %v3244 = vpop.trf.xlu0
    %v3245 = vpop.trf.xlu0
    %v3246 = vpop.trf.xlu0
    %3247 = vst [vmem:[#allocation2] sm:$0xff] %v3199
    %3248 = vst [vmem:[#allocation2 + $0x8] sm:$0xff] %v3231
    %3249 = vst [vmem:[#allocation2 + $0x10] sm:$0x3] %v3200
    %3250 = vst [vmem:[#allocation2 + $0x18] sm:$0x3] %v3232
    // Predicated region
    $region58: #{tpu_custom_call.1} parent=1 // pred_check
      _
    $region59: #{tpu_custom_call.1} parent=1 // pred_check_branch
      %3252 = sbr.rel (0) target = $region61
    $region60: #{tpu_custom_call.1} parent=1 // pred_region
      %s3254 = ssub.s32 512, 512
      %3255 = vsyncadd [#allocation3], %s3254
      %s3256 = sshll.u32 [#allocation2], 4
      %s3257 = int_to_ptr.vmem [resolvable:$true] %s3256
      %3262 = dma.vmem_to_hbm [thread:$0]  %s3257, 512, %s14, [#allocation3], 256, 256, 16
    $region61: #{tpu_custom_call.1} parent=1 // pred_fallthru
      _
    // Predicated region
    $region62: #{tpu_custom_call.1} parent=1 // pred_check
      _
    $region63: #{tpu_custom_call.1} parent=1 // pred_check_branch
      %3264 = sbr.rel (0) target = $region65
    $region64: #{tpu_custom_call.1} parent=1 // pred_region
      %3265 = dma.done [#allocation3], 512
    $region65: #{tpu_custom_call.1} parent=1 // pred_fallthru
      _
    %3266 = vsyncpa [#allocation3], 1

</llo_original>
